<compile_context>
chip_gen: v6e
topology: v6e:2x2x1
jax: 0.10.0
libtpu: 0.0.40
codegen_flags: <defaults>
</compile_context>

<pallas_src>
import functools

import jax
import jax.numpy as jnp
from jax.experimental import pallas as pl
from jax.experimental.pallas import tpu as pltpu

LN_EPS = 1e-5      # nn.LayerNorm default eps
ATTN_EPS = 1e-6    # LinearAttention eps


def _layernorm(x, gamma, beta):
    mu = jnp.mean(x, axis=-1, keepdims=True)
    var = jnp.mean(jnp.square(x - mu), axis=-1, keepdims=True)
    return (x - mu) * jax.lax.rsqrt(var + LN_EPS) * gamma + beta


def _elu_plus_one(x):
    # elu(x)+1 (alpha=1); exp only sees non-positive args -> no inf in the
    # unselected branch.
    return jnp.where(x > 0, x + 1.0, jnp.exp(jnp.minimum(x, 0.0)))


def _feature_attn_kernel(x_ref, src_ref, hmask_ref,
                         g1_ref, b1_ref, g2_ref, b2_ref,
                         wq_ref, wk_ref, wv_ref, wmerge_ref,
                         wmlp1x_ref, wmlp1m_ref, wmlp2_ref,
                         o_ref, msg_s,
                         *, nb, L, S, fuse_numden, approx_recip):
    C = wq_ref.shape[0]
    mm = wq_ref.dtype                     # MXU operand dtype (f32 or bf16)

    def wdot(a, w_ref):                   # f32 activation x resident weight
        w = w_ref[...]
        return jnp.dot(a.astype(w.dtype), w, preferred_element_type=jnp.float32)

    def vdot(a, b):                       # value x value, cast to the MXU dtype
        return jnp.dot(a.astype(mm), b.astype(mm),
                       preferred_element_type=jnp.float32)

    x2 = x_ref[...]                       # [nb*L, C] f32 (batch folded into rows)
    s2 = src_ref[...]                     # [nb*S, C] f32
    hmask = hmask_ref[...]                # [C, C]   f32 block-diagonal 0/1 head mask

    # ---- projections on the full row slab (big MXU M dimension) ----
    Q2 = _elu_plus_one(wdot(x2, wq_ref))  # [nb*L, C]
    K2 = _elu_plus_one(wdot(s2, wk_ref))  # [nb*S, C]
    V2 = wdot(s2, wv_ref)                 # [nb*S, C]

    # ---- linear attention: KV is batch-local -> short static loop over the nb
    #      batches in this block (nb kept small by the wrapper); per-batch
    #      results go into VMEM scratch instead of a sublane concatenate. ----
    for n in range(nb):
        Qn = Q2[n * L:(n + 1) * L]        # static, sublane-aligned row slices
        Kn = K2[n * S:(n + 1) * S]
        Vn = V2[n * S:(n + 1) * S]
        # per-head K_h^T V_h laid out block-diagonally in a [C, C] tile
        KVn = vdot(Kn.T, Vn) * hmask
        Ksum = jnp.sum(Kn, axis=0, keepdims=True)                  # [1, C]
        if fuse_numden:
            # single [L,C]x[C,2C] matmul yields numerator and denominator;
            # only used when C % 128 == 0 so the concat/splits are tile-aligned.
            Wnd = jnp.concatenate([KVn, Ksum.T * hmask], axis=1)   # [C, 2C]
            nd = vdot(Qn, Wnd)                                     # [L, 2C]
            num, den = nd[:, :C], nd[:, C:]
        else:
            num = vdot(Qn, KVn)                                    # [L, C]
            den = vdot(Qn * Ksum, hmask)                           # per-head Q.sum(K)
        d = den + ATTN_EPS
        if approx_recip:
            msg_n = num * pl.reciprocal(d, approx=True)            # EUP slot
        else:
            msg_n = num / d
        msg_s[n * L:(n + 1) * L, :] = msg_n

    # ---- merge -> norm1 -> MLP(x || msg) -> norm2 -> residual ----
    msg2 = wdot(msg_s[...], wmerge_ref)                            # [nb*L, C]
    msg2 = _layernorm(msg2, g1_ref[...], b1_ref[...])
    # concat([x, msg], -1) @ Wmlp1^T == x @ Wmlp1^T[:C] + msg @ Wmlp1^T[C:]
    h = jnp.maximum(wdot(x2, wmlp1x_ref) + wdot(msg2, wmlp1m_ref), 0.0)  # [nb*L, 2C]
    h = wdot(h, wmlp2_ref)                                         # [nb*L, C]
    o_ref[...] = x2 + _layernorm(h, g2_ref[...], b2_ref[...])


def _pick_batch_block(N, L, S, requested=None, *, min_rows=512, max_nb=8,
                      min_steps=4):
    """Pick batches-per-grid-step: a divisor of N whose row blocks are
    sublane-aligned, preferring a multi-step grid over one huge slab."""
    divs = [d for d in range(1, N + 1) if N % d == 0]
    valid = [d for d in divs
             if d == N or ((d * L) % 8 == 0 and (d * S) % 8 == 0)]
    if requested is not None:
        cands = [d for d in valid if d <= requested]
        return max(cands) if cands else min(valid)
    for d in valid:
        if d * L >= min_rows or d >= max_nb or N // d <= min_steps:
            return d
    return valid[-1]


def feature_attention_layer(x, source, params, nhead, *,
                            batch_block=None,
                            matmul_dtype=jnp.bfloat16,
                            approx_reciprocal=None,
                            vmem_limit_bytes=48 * 1024 * 1024):
    """x: [N, L, C], source: [N, S, C] -> [N, L, C].

    Defaults target TPU perf: bf16 MXU operands (f32 accumulate, f32 VPU/EUP
    math), a multi-step 'parallel' batch grid, ~48 MiB VMEM budget (fits v7x's
    64 MiB with headroom).  Pass matmul_dtype=jnp.float32 to match the f32
    PyTorch reference to ~1e-4.
    """
    N, L, C = x.shape
    _, S, _ = source.shape
    assert C % nhead == 0
    D = C // nhead
    f32 = jnp.float32
    mm = jnp.dtype(matmul_dtype)
    if approx_reciprocal is None:
        approx_reciprocal = (mm != jnp.dtype(jnp.float32))
    fuse_numden = (C % 128 == 0)

    nb = _pick_batch_block(N, L, S, batch_block)
    grid = (N // nb,)

    # Host-side weight prep: transpose to [in, out], split Wmlp1 into its x-
    # and msg- halves (removes the in-kernel lane concat), cast MXU operands.
    wq_t = params["wq"].T.astype(mm)
    wk_t = params["wk"].T.astype(mm)
    wv_t = params["wv"].T.astype(mm)
    wmerge_t = params["wmerge"].T.astype(mm)
    wmlp1_t = params["wmlp1"].T                 # [2C(in), 2C(out)]
    wmlp1x_t = wmlp1_t[:C].astype(mm)           # x   half
    wmlp1m_t = wmlp1_t[C:].astype(mm)           # msg half
    wmlp2_t = params["wmlp2"].T.astype(mm)      # [2C, C]
    g1 = params["g1"].reshape(1, C).astype(f32)
    b1 = params["b1"].reshape(1, C).astype(f32)
    g2 = params["g2"].reshape(1, C).astype(f32)
    b2 = params["b2"].reshape(1, C).astype(f32)

    # Block-diagonal head mask, hoisted out of the kernel (resident input).
    ri = jnp.arange(C)[:, None] // D
    ci = jnp.arange(C)[None, :] // D
    hmask = (ri == ci).astype(f32)

    # Fold batch into rows (free host reshape): [N*L, C] / [N*S, C].
    x2 = x.reshape(N * L, C).astype(f32)
    s2 = source.reshape(N * S, C).astype(f32)

    kernel = functools.partial(_feature_attn_kernel, nb=nb, L=L, S=S,
                               fuse_numden=fuse_numden,
                               approx_recip=approx_reciprocal)
    resident = lambda r, c: pl.BlockSpec((r, c), lambda i: (0, 0))
    # TODO(synk): mark the resident weight specs pipeline_mode=pl.Buffered(1)
    # to drop their second (useless) VMEM buffer on v7x once exercised here.

    out2 = pl.pallas_call(
        kernel,
        out_shape=jax.ShapeDtypeStruct((N * L, C), f32),
        grid_spec=pltpu.PrefetchScalarGridSpec(
            num_scalar_prefetch=0,
            grid=grid,
            in_specs=[
                pl.BlockSpec((nb * L, C), lambda i: (i, 0)),   # x rows
                pl.BlockSpec((nb * S, C), lambda i: (i, 0)),   # source rows
                resident(C, C),                                # head mask
                resident(1, C), resident(1, C),                # norm1 gamma/beta
                resident(1, C), resident(1, C),                # norm2 gamma/beta
                resident(C, C),                                # Wq^T
                resident(C, C),                                # Wk^T
                resident(C, C),                                # Wv^T
                resident(C, C),                                # Wmerge^T
                resident(C, 2 * C),                            # Wmlp1^T (x half)
                resident(C, 2 * C),                            # Wmlp1^T (msg half)
                resident(2 * C, C),                            # Wmlp2^T
            ],
            out_specs=pl.BlockSpec((nb * L, C), lambda i: (i, 0)),
            scratch_shapes=[pltpu.VMEM((nb * L, C), f32)],     # per-batch msg slab
        ),
        compiler_params=pltpu.CompilerParams(
            dimension_semantics=("parallel",),
            vmem_limit_bytes=vmem_limit_bytes),
    )(x2, s2, hmask, g1, b1, g2, b2,
      wq_t, wk_t, wv_t, wmerge_t, wmlp1x_t, wmlp1m_t, wmlp2_t)
    return out2.reshape(N, L, C)


# -------------------- pure-JAX reference (mirrors the PyTorch spec) --------------------
def _ref_forward(x, source, p, nhead):
    N, L, C = x.shape
    S = source.shape[1]
    D = C // nhead

    def ln(t, g, b):
        mu = t.mean(-1, keepdims=True)
        var = ((t - mu) ** 2).mean(-1, keepdims=True)
        return (t - mu) / jnp.sqrt(var + LN_EPS) * g + b

    def elu1(t):
        return jnp.where(t > 0, t + 1.0, jnp.exp(jnp.minimum(t, 0.0)))

    q = x @ p["wq"].T
    k = source @ p["wk"].T
    v = source @ p["wv"].T
    Q = elu1(q).reshape(N, L, nhead, D)
    K = elu1(k).reshape(N, S, nhead, D)
    V = (v / S).reshape(N, S, nhead, D)
    KV = jnp.einsum("nshd,nshv->nhdv", K, V)
    Z = 1.0 / (jnp.einsum("nlhd,nhd->nlh", Q, K.sum(1)) + ATTN_EPS)
    msg = jnp.einsum("nlhd,nhdv,nlh->nlhv", Q, KV, Z) * S
    msg = msg.reshape(N, L, C) @ p["wmerge"].T
    msg = ln(msg, p["g1"], p["b1"])
    h = jnp.concatenate([x, msg], axis=-1)
    h = jnp.maximum(h @ p["wmlp1"].T, 0.0) @ p["wmlp2"].T
    msg = ln(h, p["g2"], p["b2"])
    return x + msg


# ------------------------------------------------------------------------------
if __name__ == "__main__":
    N, L, S, C, nhead = 4, 16, 24, 32, 4   # d_model=32, head_dim=8

    key = jax.random.PRNGKey(0)
    ks = jax.random.split(key, 12)
    scale = 0.05
    params = {
        "g1": 1.0 + 0.1 * jax.random.normal(ks[0], (C,), jnp.float32),
        "b1": 0.1 * jax.random.normal(ks[1], (C,), jnp.float32),
        "g2": 1.0 + 0.1 * jax.random.normal(ks[2], (C,), jnp.float32),
        "b2": 0.1 * jax.random.normal(ks[3], (C,), jnp.float32),
        "wq":     scale * jax.random.normal(ks[4], (C, C), jnp.float32),
        "wk":     scale * jax.random.normal(ks[5], (C, C), jnp.float32),
        "wv":     scale * jax.random.normal(ks[6], (C, C), jnp.float32),
        "wmerge": scale * jax.random.normal(ks[7], (C, C), jnp.float32),
        "wmlp1":  scale * jax.random.normal(ks[8], (2 * C, 2 * C), jnp.float32),
        "wmlp2":  scale * jax.random.normal(ks[9], (C, 2 * C), jnp.float32),
    }

    x = jax.random.normal(ks[10], (N, L, C), jnp.float32)
    source = jax.random.normal(ks[11], (N, S, C), jnp.float32)

    # default perf path: bf16 MXU operands, EUP reciprocal, multi-step grid
    out = feature_attention_layer(x, source, params, nhead)
    out = jax.block_until_ready(out)

    # accuracy path: f32 MXU operands, exact divide
    out_f32 = feature_attention_layer(x, source, params, nhead,
                                      matmul_dtype=jnp.float32)
    out_f32 = jax.block_until_ready(out_f32)

    ref = _ref_forward(x, source, params, nhead)
    assert out.shape == (N, L, C)
    assert jnp.allclose(out_f32, ref, atol=2e-4, rtol=2e-4), \
        "f32 path mismatch vs JAX reference"
    assert jnp.allclose(out, ref, atol=6e-2, rtol=6e-2), \
        "bf16 path mismatch vs JAX reference"

    print("KERNEL_OK")
</pallas_src>

<mosaic_0001>
module attributes {stable_mosaic.version = 11 : i64} {
  func.func @_feature_attn_kernel(%arg0: i32, %arg1: memref<16x32xf32, #tpu.memory_space<vmem>>, %arg2: memref<24x32xf32, #tpu.memory_space<vmem>>, %arg3: memref<32x32xf32, #tpu.memory_space<vmem>>, %arg4: memref<1x32xf32, #tpu.memory_space<vmem>>, %arg5: memref<1x32xf32, #tpu.memory_space<vmem>>, %arg6: memref<1x32xf32, #tpu.memory_space<vmem>>, %arg7: memref<1x32xf32, #tpu.memory_space<vmem>>, %arg8: memref<32x32xbf16, #tpu.memory_space<vmem>>, %arg9: memref<32x32xbf16, #tpu.memory_space<vmem>>, %arg10: memref<32x32xbf16, #tpu.memory_space<vmem>>, %arg11: memref<32x32xbf16, #tpu.memory_space<vmem>>, %arg12: memref<32x64xbf16, #tpu.memory_space<vmem>>, %arg13: memref<32x64xbf16, #tpu.memory_space<vmem>>, %arg14: memref<64x32xbf16, #tpu.memory_space<vmem>>, %arg15: memref<16x32xf32, #tpu.memory_space<vmem>>, %arg16: memref<16x32xf32, #tpu.memory_space<vmem>>) attributes {dimension_semantics = [#tpu.dimension_semantics<parallel>], iteration_bounds = array<i64: 4>, scalar_prefetch = 0 : i64, scratch_operands = 1 : i64, tpu.core_type = #tpu.core_type<tc>, window_params = [{transform_indices = @transform_0, window_bounds = array<i64: 16, 32>}, {transform_indices = @transform_1, window_bounds = array<i64: 24, 32>}, {pipeline_mode = #tpu.pipeline_mode<synchronous>, transform_indices = @transform_2, window_bounds = array<i64: 32, 32>}, {pipeline_mode = #tpu.pipeline_mode<synchronous>, transform_indices = @transform_3, window_bounds = array<i64: 1, 32>}, {pipeline_mode = #tpu.pipeline_mode<synchronous>, transform_indices = @transform_4, window_bounds = array<i64: 1, 32>}, {pipeline_mode = #tpu.pipeline_mode<synchronous>, transform_indices = @transform_5, window_bounds = array<i64: 1, 32>}, {pipeline_mode = #tpu.pipeline_mode<synchronous>, transform_indices = @transform_6, window_bounds = array<i64: 1, 32>}, {pipeline_mode = #tpu.pipeline_mode<synchronous>, transform_indices = @transform_7, window_bounds = array<i64: 32, 32>}, {pipeline_mode = #tpu.pipeline_mode<synchronous>, transform_indices = @transform_8, window_bounds = array<i64: 32, 32>}, {pipeline_mode = #tpu.pipeline_mode<synchronous>, transform_indices = @transform_9, window_bounds = array<i64: 32, 32>}, {pipeline_mode = #tpu.pipeline_mode<synchronous>, transform_indices = @transform_10, window_bounds = array<i64: 32, 32>}, {pipeline_mode = #tpu.pipeline_mode<synchronous>, transform_indices = @transform_11, window_bounds = array<i64: 32, 64>}, {pipeline_mode = #tpu.pipeline_mode<synchronous>, transform_indices = @transform_12, window_bounds = array<i64: 32, 64>}, {pipeline_mode = #tpu.pipeline_mode<synchronous>, transform_indices = @transform_13, window_bounds = array<i64: 64, 32>}, {transform_indices = @transform_14, window_bounds = array<i64: 16, 32>}]} {
    %c0 = arith.constant 0 : index
    %c0_0 = arith.constant 0 : index
    %0 = vector.load %arg1[%c0, %c0_0] : memref<16x32xf32, #tpu.memory_space<vmem>>, vector<16x32xf32>
    %c0_1 = arith.constant 0 : index
    %c0_2 = arith.constant 0 : index
    %1 = vector.load %arg2[%c0_1, %c0_2] : memref<24x32xf32, #tpu.memory_space<vmem>>, vector<24x32xf32>
    %c0_3 = arith.constant 0 : index
    %c0_4 = arith.constant 0 : index
    %2 = vector.load %arg3[%c0_3, %c0_4] : memref<32x32xf32, #tpu.memory_space<vmem>>, vector<32x32xf32>
    %c0_5 = arith.constant 0 : index
    %c0_6 = arith.constant 0 : index
    %3 = vector.load %arg8[%c0_5, %c0_6] : memref<32x32xbf16, #tpu.memory_space<vmem>>, vector<32x32xbf16>
    %4 = arith.truncf %0 : vector<16x32xf32> to vector<16x32xbf16>
    %cst = arith.constant dense<0.000000e+00> : vector<16x32xf32>
    %5 = tpu.matmul %4, %3, %cst {dimension_numbers = #tpu.dot_dimension_numbers<[1], [0], [0], [1], [0, 0, 1, 1], [], []>} : vector<16x32xbf16>, vector<32x32xbf16>, vector<16x32xf32> -> vector<16x32xf32>
    %cst_7 = arith.constant 0.000000e+00 : f32
    %6 = vector.broadcast %cst_7 : f32 to vector<16x32xf32>
    %7 = arith.cmpf ogt, %5, %6 : vector<16x32xf32>
    %cst_8 = arith.constant 1.000000e+00 : f32
    %8 = vector.broadcast %cst_8 : f32 to vector<16x32xf32>
    %9 = arith.addf %5, %8 : vector<16x32xf32>
    %cst_9 = arith.constant 0.000000e+00 : f32
    %10 = vector.broadcast %cst_9 : f32 to vector<16x32xf32>
    %11 = arith.minimumf %5, %10 : vector<16x32xf32>
    %12 = math.exp %11 : vector<16x32xf32>
    %13 = arith.select %7, %9, %12 : vector<16x32xi1>, vector<16x32xf32>
    %c0_10 = arith.constant 0 : index
    %c0_11 = arith.constant 0 : index
    %14 = vector.load %arg9[%c0_10, %c0_11] : memref<32x32xbf16, #tpu.memory_space<vmem>>, vector<32x32xbf16>
    %15 = arith.truncf %1 : vector<24x32xf32> to vector<24x32xbf16>
    %cst_12 = arith.constant dense<0.000000e+00> : vector<24x32xf32>
    %16 = tpu.matmul %15, %14, %cst_12 {dimension_numbers = #tpu.dot_dimension_numbers<[1], [0], [0], [1], [0, 0, 1, 1], [], []>} : vector<24x32xbf16>, vector<32x32xbf16>, vector<24x32xf32> -> vector<24x32xf32>
    %cst_13 = arith.constant 0.000000e+00 : f32
    %17 = vector.broadcast %cst_13 : f32 to vector<24x32xf32>
    %18 = arith.cmpf ogt, %16, %17 : vector<24x32xf32>
    %cst_14 = arith.constant 1.000000e+00 : f32
    %19 = vector.broadcast %cst_14 : f32 to vector<24x32xf32>
    %20 = arith.addf %16, %19 : vector<24x32xf32>
    %cst_15 = arith.constant 0.000000e+00 : f32
    %21 = vector.broadcast %cst_15 : f32 to vector<24x32xf32>
    %22 = arith.minimumf %16, %21 : vector<24x32xf32>
    %23 = math.exp %22 : vector<24x32xf32>
    %24 = arith.select %18, %20, %23 : vector<24x32xi1>, vector<24x32xf32>
    %c0_16 = arith.constant 0 : index
    %c0_17 = arith.constant 0 : index
    %25 = vector.load %arg10[%c0_16, %c0_17] : memref<32x32xbf16, #tpu.memory_space<vmem>>, vector<32x32xbf16>
    %26 = arith.truncf %1 : vector<24x32xf32> to vector<24x32xbf16>
    %cst_18 = arith.constant dense<0.000000e+00> : vector<24x32xf32>
    %27 = tpu.matmul %26, %25, %cst_18 {dimension_numbers = #tpu.dot_dimension_numbers<[1], [0], [0], [1], [0, 0, 1, 1], [], []>} : vector<24x32xbf16>, vector<32x32xbf16>, vector<24x32xf32> -> vector<24x32xf32>
    %28 = tpu.transpose %24, [1, 0] : vector<24x32xf32> -> vector<32x24xf32>
    %29 = arith.truncf %28 : vector<32x24xf32> to vector<32x24xbf16>
    %30 = arith.truncf %27 : vector<24x32xf32> to vector<24x32xbf16>
    %cst_19 = arith.constant dense<0.000000e+00> : vector<32x32xf32>
    %31 = tpu.matmul %29, %30, %cst_19 {dimension_numbers = #tpu.dot_dimension_numbers<[1], [0], [0], [1], [0, 0, 1, 1], [], []>} : vector<32x24xbf16>, vector<24x32xbf16>, vector<32x32xf32> -> vector<32x32xf32>
    %32 = arith.mulf %31, %2 : vector<32x32xf32>
    %cst_20 = arith.constant dense<0.000000e+00> : vector<32xf32>
    %33 = vector.multi_reduction <add>, %24, %cst_20 [0] : vector<24x32xf32> to vector<32xf32>
    %34 = vector.shape_cast %33 : vector<32xf32> to vector<1x32xf32>
    %35 = arith.truncf %13 : vector<16x32xf32> to vector<16x32xbf16>
    %36 = arith.truncf %32 : vector<32x32xf32> to vector<32x32xbf16>
    %cst_21 = arith.constant dense<0.000000e+00> : vector<16x32xf32>
    %37 = tpu.matmul %35, %36, %cst_21 {dimension_numbers = #tpu.dot_dimension_numbers<[1], [0], [0], [1], [0, 0, 1, 1], [], []>} : vector<16x32xbf16>, vector<32x32xbf16>, vector<16x32xf32> -> vector<16x32xf32>
    %38 = vector.broadcast %34 : vector<1x32xf32> to vector<16x32xf32>
    %39 = arith.mulf %13, %38 : vector<16x32xf32>
    %40 = arith.truncf %39 : vector<16x32xf32> to vector<16x32xbf16>
    %41 = arith.truncf %2 : vector<32x32xf32> to vector<32x32xbf16>
    %cst_22 = arith.constant dense<0.000000e+00> : vector<16x32xf32>
    %42 = tpu.matmul %40, %41, %cst_22 {dimension_numbers = #tpu.dot_dimension_numbers<[1], [0], [0], [1], [0, 0, 1, 1], [], []>} : vector<16x32xbf16>, vector<32x32xbf16>, vector<16x32xf32> -> vector<16x32xf32>
    %cst_23 = arith.constant 9.99999997E-7 : f32
    %43 = vector.broadcast %cst_23 : f32 to vector<16x32xf32>
    %44 = arith.addf %42, %43 : vector<16x32xf32>
    %45 = tpu.reciprocal %44 {approx = true} : vector<16x32xf32> -> vector<16x32xf32>
    %46 = arith.mulf %37, %45 : vector<16x32xf32>
    %c0_24 = arith.constant 0 : index
    %c0_25 = arith.constant 0 : index
    %47 = vector.load %arg16[%c0_24, %c0_25] : memref<16x32xf32, #tpu.memory_space<vmem>>, vector<16x32xf32>
    tpu.vector_store %arg16[%c0_24, %c0_25], %46 {strides = array<i32>} : memref<16x32xf32, #tpu.memory_space<vmem>>, vector<16x32xf32>,
    %c0_26 = arith.constant 0 : index
    %c0_27 = arith.constant 0 : index
    %48 = vector.load %arg16[%c0_26, %c0_27] : memref<16x32xf32, #tpu.memory_space<vmem>>, vector<16x32xf32>
    %c0_28 = arith.constant 0 : index
    %c0_29 = arith.constant 0 : index
    %49 = vector.load %arg11[%c0_28, %c0_29] : memref<32x32xbf16, #tpu.memory_space<vmem>>, vector<32x32xbf16>
    %50 = arith.truncf %48 : vector<16x32xf32> to vector<16x32xbf16>
    %cst_30 = arith.constant dense<0.000000e+00> : vector<16x32xf32>
    %51 = tpu.matmul %50, %49, %cst_30 {dimension_numbers = #tpu.dot_dimension_numbers<[1], [0], [0], [1], [0, 0, 1, 1], [], []>} : vector<16x32xbf16>, vector<32x32xbf16>, vector<16x32xf32> -> vector<16x32xf32>
    %c0_31 = arith.constant 0 : index
    %c0_32 = arith.constant 0 : index
    %52 = vector.load %arg4[%c0_31, %c0_32] : memref<1x32xf32, #tpu.memory_space<vmem>>, vector<1x32xf32>
    %c0_33 = arith.constant 0 : index
    %c0_34 = arith.constant 0 : index
    %53 = vector.load %arg5[%c0_33, %c0_34] : memref<1x32xf32, #tpu.memory_space<vmem>>, vector<1x32xf32>
    %cst_35 = arith.constant dense<0.000000e+00> : vector<16xf32>
    %54 = vector.multi_reduction <add>, %51, %cst_35 [1] : vector<16x32xf32> to vector<16xf32>
    %55 = vector.shape_cast %54 : vector<16xf32> to vector<16x1xf32>
    %cst_36 = arith.constant 3.200000e+01 : f32
    %56 = vector.broadcast %cst_36 : f32 to vector<16x1xf32>
    %57 = arith.divf %55, %56 : vector<16x1xf32>
    %58 = vector.broadcast %57 : vector<16x1xf32> to vector<16x32xf32>
    %59 = arith.subf %51, %58 : vector<16x32xf32>
    %60 = arith.mulf %59, %59 : vector<16x32xf32>
    %cst_37 = arith.constant dense<0.000000e+00> : vector<16xf32>
    %61 = vector.multi_reduction <add>, %60, %cst_37 [1] : vector<16x32xf32> to vector<16xf32>
    %62 = vector.shape_cast %61 : vector<16xf32> to vector<16x1xf32>
    %cst_38 = arith.constant 3.200000e+01 : f32
    %63 = vector.broadcast %cst_38 : f32 to vector<16x1xf32>
    %64 = arith.divf %62, %63 : vector<16x1xf32>
    %65 = vector.broadcast %57 : vector<16x1xf32> to vector<16x32xf32>
    %66 = arith.subf %51, %65 : vector<16x32xf32>
    %cst_39 = arith.constant 9.99999974E-6 : f32
    %67 = vector.broadcast %cst_39 : f32 to vector<16x1xf32>
    %68 = arith.addf %64, %67 : vector<16x1xf32>
    %69 = math.rsqrt %68 : vector<16x1xf32>
    %70 = vector.broadcast %69 : vector<16x1xf32> to vector<16x32xf32>
    %71 = arith.mulf %66, %70 : vector<16x32xf32>
    %72 = vector.broadcast %52 : vector<1x32xf32> to vector<16x32xf32>
    %73 = arith.mulf %71, %72 : vector<16x32xf32>
    %74 = vector.broadcast %53 : vector<1x32xf32> to vector<16x32xf32>
    %75 = arith.addf %73, %74 : vector<16x32xf32>
    %c0_40 = arith.constant 0 : index
    %c0_41 = arith.constant 0 : index
    %76 = vector.load %arg12[%c0_40, %c0_41] : memref<32x64xbf16, #tpu.memory_space<vmem>>, vector<32x64xbf16>
    %77 = arith.truncf %0 : vector<16x32xf32> to vector<16x32xbf16>
    %cst_42 = arith.constant dense<0.000000e+00> : vector<16x64xf32>
    %78 = tpu.matmul %77, %76, %cst_42 {dimension_numbers = #tpu.dot_dimension_numbers<[1], [0], [0], [1], [0, 0, 1, 1], [], []>} : vector<16x32xbf16>, vector<32x64xbf16>, vector<16x64xf32> -> vector<16x64xf32>
    %c0_43 = arith.constant 0 : index
    %c0_44 = arith.constant 0 : index
    %79 = vector.load %arg13[%c0_43, %c0_44] : memref<32x64xbf16, #tpu.memory_space<vmem>>, vector<32x64xbf16>
    %80 = arith.truncf %75 : vector<16x32xf32> to vector<16x32xbf16>
    %cst_45 = arith.constant dense<0.000000e+00> : vector<16x64xf32>
    %81 = tpu.matmul %80, %79, %cst_45 {dimension_numbers = #tpu.dot_dimension_numbers<[1], [0], [0], [1], [0, 0, 1, 1], [], []>} : vector<16x32xbf16>, vector<32x64xbf16>, vector<16x64xf32> -> vector<16x64xf32>
    %82 = arith.addf %78, %81 : vector<16x64xf32>
    %cst_46 = arith.constant 0.000000e+00 : f32
    %83 = vector.broadcast %cst_46 : f32 to vector<16x64xf32>
    %84 = arith.maximumf %82, %83 : vector<16x64xf32>
    %c0_47 = arith.constant 0 : index
    %c0_48 = arith.constant 0 : index
    %85 = vector.load %arg14[%c0_47, %c0_48] : memref<64x32xbf16, #tpu.memory_space<vmem>>, vector<64x32xbf16>
    %86 = arith.truncf %84 : vector<16x64xf32> to vector<16x64xbf16>
    %cst_49 = arith.constant dense<0.000000e+00> : vector<16x32xf32>
    %87 = tpu.matmul %86, %85, %cst_49 {dimension_numbers = #tpu.dot_dimension_numbers<[1], [0], [0], [1], [0, 0, 1, 1], [], []>} : vector<16x64xbf16>, vector<64x32xbf16>, vector<16x32xf32> -> vector<16x32xf32>
    %c0_50 = arith.constant 0 : index
    %c0_51 = arith.constant 0 : index
    %88 = vector.load %arg6[%c0_50, %c0_51] : memref<1x32xf32, #tpu.memory_space<vmem>>, vector<1x32xf32>
    %c0_52 = arith.constant 0 : index
    %c0_53 = arith.constant 0 : index
    %89 = vector.load %arg7[%c0_52, %c0_53] : memref<1x32xf32, #tpu.memory_space<vmem>>, vector<1x32xf32>
    %cst_54 = arith.constant dense<0.000000e+00> : vector<16xf32>
    %90 = vector.multi_reduction <add>, %87, %cst_54 [1] : vector<16x32xf32> to vector<16xf32>
    %91 = vector.shape_cast %90 : vector<16xf32> to vector<16x1xf32>
    %cst_55 = arith.constant 3.200000e+01 : f32
    %92 = vector.broadcast %cst_55 : f32 to vector<16x1xf32>
    %93 = arith.divf %91, %92 : vector<16x1xf32>
    %94 = vector.broadcast %93 : vector<16x1xf32> to vector<16x32xf32>
    %95 = arith.subf %87, %94 : vector<16x32xf32>
    %96 = arith.mulf %95, %95 : vector<16x32xf32>
    %cst_56 = arith.constant dense<0.000000e+00> : vector<16xf32>
    %97 = vector.multi_reduction <add>, %96, %cst_56 [1] : vector<16x32xf32> to vector<16xf32>
    %98 = vector.shape_cast %97 : vector<16xf32> to vector<16x1xf32>
    %cst_57 = arith.constant 3.200000e+01 : f32
    %99 = vector.broadcast %cst_57 : f32 to vector<16x1xf32>
    %100 = arith.divf %98, %99 : vector<16x1xf32>
    %101 = vector.broadcast %93 : vector<16x1xf32> to vector<16x32xf32>
    %102 = arith.subf %87, %101 : vector<16x32xf32>
    %cst_58 = arith.constant 9.99999974E-6 : f32
    %103 = vector.broadcast %cst_58 : f32 to vector<16x1xf32>
    %104 = arith.addf %100, %103 : vector<16x1xf32>
    %105 = math.rsqrt %104 : vector<16x1xf32>
    %106 = vector.broadcast %105 : vector<16x1xf32> to vector<16x32xf32>
    %107 = arith.mulf %102, %106 : vector<16x32xf32>
    %108 = vector.broadcast %88 : vector<1x32xf32> to vector<16x32xf32>
    %109 = arith.mulf %107, %108 : vector<16x32xf32>
    %110 = vector.broadcast %89 : vector<1x32xf32> to vector<16x32xf32>
    %111 = arith.addf %109, %110 : vector<16x32xf32>
    %112 = arith.addf %0, %111 : vector<16x32xf32>
    %c0_59 = arith.constant 0 : index
    %c0_60 = arith.constant 0 : index
    %113 = vector.load %arg15[%c0_59, %c0_60] : memref<16x32xf32, #tpu.memory_space<vmem>>, vector<16x32xf32>
    tpu.vector_store %arg15[%c0_59, %c0_60], %112 {strides = array<i32>} : memref<16x32xf32, #tpu.memory_space<vmem>>, vector<16x32xf32>,
    return
  }
  func.func @transform_0(%arg0: i32) -> (i32, i32) {
    %c0_i32 = arith.constant 0 : i32
    %c0_i32_0 = arith.constant 0 : i32
    return %arg0, %c0_i32 : i32, i32
  }
  func.func @transform_1(%arg0: i32) -> (i32, i32) {
    %c0_i32 = arith.constant 0 : i32
    %c0_i32_0 = arith.constant 0 : i32
    return %arg0, %c0_i32 : i32, i32
  }
  func.func @transform_2(%arg0: i32) -> (i32, i32) {
    %c0_i32 = arith.constant 0 : i32
    %c0_i32_0 = arith.constant 0 : i32
    %c0_i32_1 = arith.constant 0 : i32
    return %c0_i32, %c0_i32_0 : i32, i32
  }
  func.func @transform_3(%arg0: i32) -> (i32, i32) {
    %c0_i32 = arith.constant 0 : i32
    %c0_i32_0 = arith.constant 0 : i32
    %c0_i32_1 = arith.constant 0 : i32
    return %c0_i32, %c0_i32_0 : i32, i32
  }
  func.func @transform_4(%arg0: i32) -> (i32, i32) {
    %c0_i32 = arith.constant 0 : i32
    %c0_i32_0 = arith.constant 0 : i32
    %c0_i32_1 = arith.constant 0 : i32
    return %c0_i32, %c0_i32_0 : i32, i32
  }
  func.func @transform_5(%arg0: i32) -> (i32, i32) {
    %c0_i32 = arith.constant 0 : i32
    %c0_i32_0 = arith.constant 0 : i32
    %c0_i32_1 = arith.constant 0 : i32
    return %c0_i32, %c0_i32_0 : i32, i32
  }
  func.func @transform_6(%arg0: i32) -> (i32, i32) {
    %c0_i32 = arith.constant 0 : i32
    %c0_i32_0 = arith.constant 0 : i32
    %c0_i32_1 = arith.constant 0 : i32
    return %c0_i32, %c0_i32_0 : i32, i32
  }
  func.func @transform_7(%arg0: i32) -> (i32, i32) {
    %c0_i32 = arith.constant 0 : i32
    %c0_i32_0 = arith.constant 0 : i32
    %c0_i32_1 = arith.constant 0 : i32
    return %c0_i32, %c0_i32_0 : i32, i32
  }
  func.func @transform_8(%arg0: i32) -> (i32, i32) {
    %c0_i32 = arith.constant 0 : i32
    %c0_i32_0 = arith.constant 0 : i32
    %c0_i32_1 = arith.constant 0 : i32
    return %c0_i32, %c0_i32_0 : i32, i32
  }
  func.func @transform_9(%arg0: i32) -> (i32, i32) {
    %c0_i32 = arith.constant 0 : i32
    %c0_i32_0 = arith.constant 0 : i32
    %c0_i32_1 = arith.constant 0 : i32
    return %c0_i32, %c0_i32_0 : i32, i32
  }
  func.func @transform_10(%arg0: i32) -> (i32, i32) {
    %c0_i32 = arith.constant 0 : i32
    %c0_i32_0 = arith.constant 0 : i32
    %c0_i32_1 = arith.constant 0 : i32
    return %c0_i32, %c0_i32_0 : i32, i32
  }
  func.func @transform_11(%arg0: i32) -> (i32, i32) {
    %c0_i32 = arith.constant 0 : i32
    %c0_i32_0 = arith.constant 0 : i32
    %c0_i32_1 = arith.constant 0 : i32
    return %c0_i32, %c0_i32_0 : i32, i32
  }
  func.func @transform_12(%arg0: i32) -> (i32, i32) {
    %c0_i32 = arith.constant 0 : i32
    %c0_i32_0 = arith.constant 0 : i32
    %c0_i32_1 = arith.constant 0 : i32
    return %c0_i32, %c0_i32_0 : i32, i32
  }
  func.func @transform_13(%arg0: i32) -> (i32, i32) {
    %c0_i32 = arith.constant 0 : i32
    %c0_i32_0 = arith.constant 0 : i32
    %c0_i32_1 = arith.constant 0 : i32
    return %c0_i32, %c0_i32_0 : i32, i32
  }
  func.func @transform_14(%arg0: i32) -> (i32, i32) {
    %c0_i32 = arith.constant 0 : i32
    %c0_i32_0 = arith.constant 0 : i32
    return %arg0, %c0_i32 : i32, i32
  }
}

</mosaic_0001>

<llo_original>
// kernel: tpu_custom_call.1
$region0: #{tpu_custom_call.1}
  #allocation0 [shape = 'u32[]', space=smem, size = 0x4, offset = 0x4, fixed_abs, tag = 'smem constant byte address 0x4 - core index']
  #allocation1 [shape = 'u32[144,128]{1,0:T(1,128)}', space=vmem, size = 0x12000, scoped, tag = 'internal scratch']
  #allocation2 [shape = 'f32[16,32]{1,0:T(8,128)}', space=vmem, size = 0x2000, scoped, tag = 'scratch operand']
  %s0 = inlined_call_operand.vmem [shape: f32[64,32], index: 0, kind: input, shape index: {}]
  %s1 = inlined_call_operand.vmem [shape: f32[96,32], index: 1, kind: input, shape index: {}]
  %s2 = inlined_call_operand.vmem [shape: f32[32,32], index: 2, kind: input, shape index: {}]
  %s3 = inlined_call_operand.vmem [shape: f32[1,32], index: 3, kind: input, shape index: {}]
  %s4 = inlined_call_operand.vmem [shape: f32[1,32], index: 4, kind: input, shape index: {}]
  %s5 = inlined_call_operand.vmem [shape: f32[1,32], index: 5, kind: input, shape index: {}]
  %s6 = inlined_call_operand.vmem [shape: f32[1,32], index: 6, kind: input, shape index: {}]
  %s7 = inlined_call_operand.vmem [shape: bf16[32,32], index: 7, kind: input, shape index: {}]
  %s8 = inlined_call_operand.vmem [shape: bf16[32,32], index: 8, kind: input, shape index: {}]
  %s9 = inlined_call_operand.vmem [shape: bf16[32,32], index: 9, kind: input, shape index: {}]
  %s10 = inlined_call_operand.vmem [shape: bf16[32,32], index: 10, kind: input, shape index: {}]
  %s11 = inlined_call_operand.vmem [shape: bf16[32,64], index: 11, kind: input, shape index: {}]
  %s12 = inlined_call_operand.vmem [shape: bf16[32,64], index: 12, kind: input, shape index: {}]
  %s13 = inlined_call_operand.vmem [shape: bf16[64,32], index: 13, kind: input, shape index: {}]
  %s14 = inlined_call_operand.vmem [shape: f32[64,32], index: 14, kind: output, shape index: {}]
  %s15 = sld [smem:[#allocation0]]
  $region89: #{tpu_custom_call.1} parent=0
    _
  %s17 = ssub.s32 1, %s15
  %s18 = scalar_select 0, %s17, %s15
  loop: start=0, step=1, limit=6
  $region2: #{tpu_custom_call.1} parent=0 // loop_pre_header
    _
  $region3: #{tpu_custom_call.1} parent=0 // loop_header
    %s20 = sphi 0, %s24
    %p21 = scmp.ge.s32.totalorder %s20, 6
    %s30 = sphi 0, %s32
    %s33 = sphi 0, %s30
    %s34 = sphi 0, %s33
    %s50 = sphi 0, %s34
    %s56 = sphi 0, %s58
    %s59 = sphi 0, %s56
    %s60 = sphi 0, %s59
    %s76 = sphi 0, %s60
    %s80 = sphi 0, %s80
    %s82 = sphi 0, %s80
    %s83 = sphi 0, %s82
    %s97 = sphi 0, %s83
    %s101 = sphi 0, %s101
    %s103 = sphi 0, %s101
    %s104 = sphi 0, %s103
    %s118 = sphi 0, %s104
    %s122 = sphi 0, %s122
    %s124 = sphi 0, %s122
    %s125 = sphi 0, %s124
    %s139 = sphi 0, %s125
    %s143 = sphi 0, %s143
    %s145 = sphi 0, %s143
    %s146 = sphi 0, %s145
    %s160 = sphi 0, %s146
    %s164 = sphi 0, %s164
    %s166 = sphi 0, %s164
    %s167 = sphi 0, %s166
    %s181 = sphi 0, %s167
    %s185 = sphi 0, %s185
    %s187 = sphi 0, %s185
    %s188 = sphi 0, %s187
    %s202 = sphi 0, %s188
    %s206 = sphi 0, %s206
    %s208 = sphi 0, %s206
    %s209 = sphi 0, %s208
    %s223 = sphi 0, %s209
    %s227 = sphi 0, %s227
    %s229 = sphi 0, %s227
    %s230 = sphi 0, %s229
    %s244 = sphi 0, %s230
    %s248 = sphi 0, %s248
    %s250 = sphi 0, %s248
    %s251 = sphi 0, %s250
    %s265 = sphi 0, %s251
    %s269 = sphi 0, %s269
    %s271 = sphi 0, %s269
    %s272 = sphi 0, %s271
    %s286 = sphi 0, %s272
    %s290 = sphi 0, %s290
    %s292 = sphi 0, %s290
    %s293 = sphi 0, %s292
    %s307 = sphi 0, %s293
    %s311 = sphi 0, %s311
    %s313 = sphi 0, %s311
    %s314 = sphi 0, %s313
    %s328 = sphi 0, %s314
    %s334 = sphi 0, %s336
    %s337 = sphi 0, %s334
    %s338 = sphi 0, %s337
    %s354 = sphi 0, %s338
  $region4: #{tpu_custom_call.1} parent=0 // loop_header_branch
    %23 = sbr.rel (%p21) target = $region8
  $region5: #{tpu_custom_call.1} parent=0 // loop_body
    %s25 = ssub.s32 %s20, 1
    %s26 = ssub.s32 %s20, 2
    %s27 = sadd.s32 %s20, 1
    %s28 = ssub.s32 %s20, %s27
    %p29 = scmp.eq.s32.totalorder %s28, 0
    %s31 = sadd.s32 %s30, 1
    %s32 = scalar_select %p29, %s30, %s31
    %p35 = pneg %p29
    %p36 = scmp.eq.s32.totalorder %s20, 3
    %p37 = por %p35, %p36
    %p38 = scmp.ne.s32.totalorder %s30, %s33
    %p39 = scmp.eq.s32.totalorder %s20, 0
    %p40 = por %p38, %p39
    %p41 = scmp.ne.s32.totalorder %s30, %s33
    %p42 = scmp.eq.s32.totalorder %s25, 3
    %p43 = por %p41, %p42
    %p44 = scmp.ne.s32.totalorder %s33, %s34
    %p45 = scmp.eq.s32.totalorder %s25, 0
    %p46 = por %p44, %p45
    %p47 = scmp.ne.s32.totalorder %s33, %s34
    %p48 = scmp.eq.s32.totalorder %s26, 3
    %p49 = por %p47, %p48
    %p51 = scmp.ne.s32.totalorder %s34, %s50
    %p52 = scmp.eq.s32.totalorder %s26, 0
    %p53 = por %p51, %p52
    %s54 = ssub.s32 %s20, %s27
    %p55 = scmp.eq.s32.totalorder %s54, 0
    %s57 = sadd.s32 %s56, 1
    %s58 = scalar_select %p55, %s56, %s57
    %p61 = pneg %p55
    %p62 = scmp.eq.s32.totalorder %s20, 3
    %p63 = por %p61, %p62
    %p64 = scmp.ne.s32.totalorder %s56, %s59
    %p65 = scmp.eq.s32.totalorder %s20, 0
    %p66 = por %p64, %p65
    %p67 = scmp.ne.s32.totalorder %s56, %s59
    %p68 = scmp.eq.s32.totalorder %s25, 3
    %p69 = por %p67, %p68
    %p70 = scmp.ne.s32.totalorder %s59, %s60
    %p71 = scmp.eq.s32.totalorder %s25, 0
    %p72 = por %p70, %p71
    %p73 = scmp.ne.s32.totalorder %s59, %s60
    %p74 = scmp.eq.s32.totalorder %s26, 3
    %p75 = por %p73, %p74
    %p77 = scmp.ne.s32.totalorder %s60, %s76
    %p78 = scmp.eq.s32.totalorder %s26, 0
    %p79 = por %p77, %p78
    %s81 = sadd.s32 %s80, 1
    %p84 = scmp.eq.s32.totalorder %s20, 3
    %p85 = scmp.ne.s32.totalorder %s80, %s82
    %p86 = scmp.eq.s32.totalorder %s20, 0
    %p87 = por %p85, %p86
    %p88 = scmp.ne.s32.totalorder %s80, %s82
    %p89 = scmp.eq.s32.totalorder %s25, 3
    %p90 = por %p88, %p89
    %p91 = scmp.ne.s32.totalorder %s82, %s83
    %p92 = scmp.eq.s32.totalorder %s25, 0
    %p93 = por %p91, %p92
    %p94 = scmp.ne.s32.totalorder %s82, %s83
    %p95 = scmp.eq.s32.totalorder %s26, 3
    %p96 = por %p94, %p95
    %p98 = scmp.ne.s32.totalorder %s83, %s97
    %p99 = scmp.eq.s32.totalorder %s26, 0
    %p100 = por %p98, %p99
    %s102 = sadd.s32 %s101, 1
    %p105 = scmp.eq.s32.totalorder %s20, 3
    %p106 = scmp.ne.s32.totalorder %s101, %s103
    %p107 = scmp.eq.s32.totalorder %s20, 0
    %p108 = por %p106, %p107
    %p109 = scmp.ne.s32.totalorder %s101, %s103
    %p110 = scmp.eq.s32.totalorder %s25, 3
    %p111 = por %p109, %p110
    %p112 = scmp.ne.s32.totalorder %s103, %s104
    %p113 = scmp.eq.s32.totalorder %s25, 0
    %p114 = por %p112, %p113
    %p115 = scmp.ne.s32.totalorder %s103, %s104
    %p116 = scmp.eq.s32.totalorder %s26, 3
    %p117 = por %p115, %p116
    %p119 = scmp.ne.s32.totalorder %s104, %s118
    %p120 = scmp.eq.s32.totalorder %s26, 0
    %p121 = por %p119, %p120
    %s123 = sadd.s32 %s122, 1
    %p126 = scmp.eq.s32.totalorder %s20, 3
    %p127 = scmp.ne.s32.totalorder %s122, %s124
    %p128 = scmp.eq.s32.totalorder %s20, 0
    %p129 = por %p127, %p128
    %p130 = scmp.ne.s32.totalorder %s122, %s124
    %p131 = scmp.eq.s32.totalorder %s25, 3
    %p132 = por %p130, %p131
    %p133 = scmp.ne.s32.totalorder %s124, %s125
    %p134 = scmp.eq.s32.totalorder %s25, 0
    %p135 = por %p133, %p134
    %p136 = scmp.ne.s32.totalorder %s124, %s125
    %p137 = scmp.eq.s32.totalorder %s26, 3
    %p138 = por %p136, %p137
    %p140 = scmp.ne.s32.totalorder %s125, %s139
    %p141 = scmp.eq.s32.totalorder %s26, 0
    %p142 = por %p140, %p141
    %s144 = sadd.s32 %s143, 1
    %p147 = scmp.eq.s32.totalorder %s20, 3
    %p148 = scmp.ne.s32.totalorder %s143, %s145
    %p149 = scmp.eq.s32.totalorder %s20, 0
    %p150 = por %p148, %p149
    %p151 = scmp.ne.s32.totalorder %s143, %s145
    %p152 = scmp.eq.s32.totalorder %s25, 3
    %p153 = por %p151, %p152
    %p154 = scmp.ne.s32.totalorder %s145, %s146
    %p155 = scmp.eq.s32.totalorder %s25, 0
    %p156 = por %p154, %p155
    %p157 = scmp.ne.s32.totalorder %s145, %s146
    %p158 = scmp.eq.s32.totalorder %s26, 3
    %p159 = por %p157, %p158
    %p161 = scmp.ne.s32.totalorder %s146, %s160
    %p162 = scmp.eq.s32.totalorder %s26, 0
    %p163 = por %p161, %p162
    %s165 = sadd.s32 %s164, 1
    %p168 = scmp.eq.s32.totalorder %s20, 3
    %p169 = scmp.ne.s32.totalorder %s164, %s166
    %p170 = scmp.eq.s32.totalorder %s20, 0
    %p171 = por %p169, %p170
    %p172 = scmp.ne.s32.totalorder %s164, %s166
    %p173 = scmp.eq.s32.totalorder %s25, 3
    %p174 = por %p172, %p173
    %p175 = scmp.ne.s32.totalorder %s166, %s167
    %p176 = scmp.eq.s32.totalorder %s25, 0
    %p177 = por %p175, %p176
    %p178 = scmp.ne.s32.totalorder %s166, %s167
    %p179 = scmp.eq.s32.totalorder %s26, 3
    %p180 = por %p178, %p179
    %p182 = scmp.ne.s32.totalorder %s167, %s181
    %p183 = scmp.eq.s32.totalorder %s26, 0
    %p184 = por %p182, %p183
    %s186 = sadd.s32 %s185, 1
    %p189 = scmp.eq.s32.totalorder %s20, 3
    %p190 = scmp.ne.s32.totalorder %s185, %s187
    %p191 = scmp.eq.s32.totalorder %s20, 0
    %p192 = por %p190, %p191
    %p193 = scmp.ne.s32.totalorder %s185, %s187
    %p194 = scmp.eq.s32.totalorder %s25, 3
    %p195 = por %p193, %p194
    %p196 = scmp.ne.s32.totalorder %s187, %s188
    %p197 = scmp.eq.s32.totalorder %s25, 0
    %p198 = por %p196, %p197
    %p199 = scmp.ne.s32.totalorder %s187, %s188
    %p200 = scmp.eq.s32.totalorder %s26, 3
    %p201 = por %p199, %p200
    %p203 = scmp.ne.s32.totalorder %s188, %s202
    %p204 = scmp.eq.s32.totalorder %s26, 0
    %p205 = por %p203, %p204
    %s207 = sadd.s32 %s206, 1
    %p210 = scmp.eq.s32.totalorder %s20, 3
    %p211 = scmp.ne.s32.totalorder %s206, %s208
    %p212 = scmp.eq.s32.totalorder %s20, 0
    %p213 = por %p211, %p212
    %p214 = scmp.ne.s32.totalorder %s206, %s208
    %p215 = scmp.eq.s32.totalorder %s25, 3
    %p216 = por %p214, %p215
    %p217 = scmp.ne.s32.totalorder %s208, %s209
    %p218 = scmp.eq.s32.totalorder %s25, 0
    %p219 = por %p217, %p218
    %p220 = scmp.ne.s32.totalorder %s208, %s209
    %p221 = scmp.eq.s32.totalorder %s26, 3
    %p222 = por %p220, %p221
    %p224 = scmp.ne.s32.totalorder %s209, %s223
    %p225 = scmp.eq.s32.totalorder %s26, 0
    %p226 = por %p224, %p225
    %s228 = sadd.s32 %s227, 1
    %p231 = scmp.eq.s32.totalorder %s20, 3
    %p232 = scmp.ne.s32.totalorder %s227, %s229
    %p233 = scmp.eq.s32.totalorder %s20, 0
    %p234 = por %p232, %p233
    %p235 = scmp.ne.s32.totalorder %s227, %s229
    %p236 = scmp.eq.s32.totalorder %s25, 3
    %p237 = por %p235, %p236
    %p238 = scmp.ne.s32.totalorder %s229, %s230
    %p239 = scmp.eq.s32.totalorder %s25, 0
    %p240 = por %p238, %p239
    %p241 = scmp.ne.s32.totalorder %s229, %s230
    %p242 = scmp.eq.s32.totalorder %s26, 3
    %p243 = por %p241, %p242
    %p245 = scmp.ne.s32.totalorder %s230, %s244
    %p246 = scmp.eq.s32.totalorder %s26, 0
    %p247 = por %p245, %p246
    %s249 = sadd.s32 %s248, 1
    %p252 = scmp.eq.s32.totalorder %s20, 3
    %p253 = scmp.ne.s32.totalorder %s248, %s250
    %p254 = scmp.eq.s32.totalorder %s20, 0
    %p255 = por %p253, %p254
    %p256 = scmp.ne.s32.totalorder %s248, %s250
    %p257 = scmp.eq.s32.totalorder %s25, 3
    %p258 = por %p256, %p257
    %p259 = scmp.ne.s32.totalorder %s250, %s251
    %p260 = scmp.eq.s32.totalorder %s25, 0
    %p261 = por %p259, %p260
    %p262 = scmp.ne.s32.totalorder %s250, %s251
    %p263 = scmp.eq.s32.totalorder %s26, 3
    %p264 = por %p262, %p263
    %p266 = scmp.ne.s32.totalorder %s251, %s265
    %p267 = scmp.eq.s32.totalorder %s26, 0
    %p268 = por %p266, %p267
    %s270 = sadd.s32 %s269, 1
    %p273 = scmp.eq.s32.totalorder %s20, 3
    %p274 = scmp.ne.s32.totalorder %s269, %s271
    %p275 = scmp.eq.s32.totalorder %s20, 0
    %p276 = por %p274, %p275
    %p277 = scmp.ne.s32.totalorder %s269, %s271
    %p278 = scmp.eq.s32.totalorder %s25, 3
    %p279 = por %p277, %p278
    %p280 = scmp.ne.s32.totalorder %s271, %s272
    %p281 = scmp.eq.s32.totalorder %s25, 0
    %p282 = por %p280, %p281
    %p283 = scmp.ne.s32.totalorder %s271, %s272
    %p284 = scmp.eq.s32.totalorder %s26, 3
    %p285 = por %p283, %p284
    %p287 = scmp.ne.s32.totalorder %s272, %s286
    %p288 = scmp.eq.s32.totalorder %s26, 0
    %p289 = por %p287, %p288
    %s291 = sadd.s32 %s290, 1
    %p294 = scmp.eq.s32.totalorder %s20, 3
    %p295 = scmp.ne.s32.totalorder %s290, %s292
    %p296 = scmp.eq.s32.totalorder %s20, 0
    %p297 = por %p295, %p296
    %p298 = scmp.ne.s32.totalorder %s290, %s292
    %p299 = scmp.eq.s32.totalorder %s25, 3
    %p300 = por %p298, %p299
    %p301 = scmp.ne.s32.totalorder %s292, %s293
    %p302 = scmp.eq.s32.totalorder %s25, 0
    %p303 = por %p301, %p302
    %p304 = scmp.ne.s32.totalorder %s292, %s293
    %p305 = scmp.eq.s32.totalorder %s26, 3
    %p306 = por %p304, %p305
    %p308 = scmp.ne.s32.totalorder %s293, %s307
    %p309 = scmp.eq.s32.totalorder %s26, 0
    %p310 = por %p308, %p309
    %s312 = sadd.s32 %s311, 1
    %p315 = scmp.eq.s32.totalorder %s20, 3
    %p316 = scmp.ne.s32.totalorder %s311, %s313
    %p317 = scmp.eq.s32.totalorder %s20, 0
    %p318 = por %p316, %p317
    %p319 = scmp.ne.s32.totalorder %s311, %s313
    %p320 = scmp.eq.s32.totalorder %s25, 3
    %p321 = por %p319, %p320
    %p322 = scmp.ne.s32.totalorder %s313, %s314
    %p323 = scmp.eq.s32.totalorder %s25, 0
    %p324 = por %p322, %p323
    %p325 = scmp.ne.s32.totalorder %s313, %s314
    %p326 = scmp.eq.s32.totalorder %s26, 3
    %p327 = por %p325, %p326
    %p329 = scmp.ne.s32.totalorder %s314, %s328
    %p330 = scmp.eq.s32.totalorder %s26, 0
    %p331 = por %p329, %p330
    %s332 = ssub.s32 %s20, %s27
    %p333 = scmp.eq.s32.totalorder %s332, 0
    %s335 = sadd.s32 %s334, 1
    %s336 = scalar_select %p333, %s334, %s335
    %p339 = pneg %p333
    %p340 = scmp.eq.s32.totalorder %s20, 3
    %p341 = por %p339, %p340
    %p342 = scmp.ne.s32.totalorder %s334, %s337
    %p343 = scmp.eq.s32.totalorder %s20, 0
    %p344 = por %p342, %p343
    %p345 = scmp.ne.s32.totalorder %s334, %s337
    %p346 = scmp.eq.s32.totalorder %s25, 3
    %p347 = por %p345, %p346
    %p348 = scmp.ne.s32.totalorder %s337, %s338
    %p349 = scmp.eq.s32.totalorder %s25, 0
    %p350 = por %p348, %p349
    %p351 = scmp.ne.s32.totalorder %s337, %s338
    %p352 = scmp.eq.s32.totalorder %s26, 3
    %p353 = por %p351, %p352
    %p355 = scmp.ne.s32.totalorder %s338, %s354
    %p356 = scmp.eq.s32.totalorder %s26, 0
    %p357 = por %p355, %p356
    %p358 = scmp.le.s32.totalorder 1, %s20
    %p359 = scmp.lt.s32.totalorder %s20, 5
    %p360 = pnand %p358, %p359
    %p361 = pneg %p360
    // Predicated region
    $region9: #{tpu_custom_call.1} parent=5 // pred_check
      _
    $region10: #{tpu_custom_call.1} parent=5 // pred_check_branch
      %363 = sbr.rel (%p360) target = $region12
    $region11: #{tpu_custom_call.1} parent=5 // pred_region
      %s364 = ssub.s32 %s20, 1
      // Predicated region
      $region13: #{tpu_custom_call.1} parent=11 // pred_check
        %p365 = pneg %p93
      $region14: #{tpu_custom_call.1} parent=11 // pred_check_branch
        %367 = sbr.rel (%p365) target = $region16
      $region15: #{tpu_custom_call.1} parent=11 // pred_region
        _
      $region16: #{tpu_custom_call.1} parent=11 // pred_fallthru
        _
      // Predicated region
      $region17: #{tpu_custom_call.1} parent=11 // pred_check
        %p368 = pneg %p114
      $region18: #{tpu_custom_call.1} parent=11 // pred_check_branch
        %370 = sbr.rel (%p368) target = $region20
      $region19: #{tpu_custom_call.1} parent=11 // pred_region
        _
      $region20: #{tpu_custom_call.1} parent=11 // pred_fallthru
        _
      // Predicated region
      $region21: #{tpu_custom_call.1} parent=11 // pred_check
        %p371 = pneg %p135
      $region22: #{tpu_custom_call.1} parent=11 // pred_check_branch
        %373 = sbr.rel (%p371) target = $region24
      $region23: #{tpu_custom_call.1} parent=11 // pred_region
        _
      $region24: #{tpu_custom_call.1} parent=11 // pred_fallthru
        _
      // Predicated region
      $region25: #{tpu_custom_call.1} parent=11 // pred_check
        %p374 = pneg %p156
      $region26: #{tpu_custom_call.1} parent=11 // pred_check_branch
        %376 = sbr.rel (%p374) target = $region28
      $region27: #{tpu_custom_call.1} parent=11 // pred_region
        _
      $region28: #{tpu_custom_call.1} parent=11 // pred_fallthru
        _
      // Predicated region
      $region29: #{tpu_custom_call.1} parent=11 // pred_check
        %p377 = pneg %p177
      $region30: #{tpu_custom_call.1} parent=11 // pred_check_branch
        %379 = sbr.rel (%p377) target = $region32
      $region31: #{tpu_custom_call.1} parent=11 // pred_region
        _
      $region32: #{tpu_custom_call.1} parent=11 // pred_fallthru
        _
      // Predicated region
      $region33: #{tpu_custom_call.1} parent=11 // pred_check
        %p380 = pneg %p198
      $region34: #{tpu_custom_call.1} parent=11 // pred_check_branch
        %382 = sbr.rel (%p380) target = $region36
      $region35: #{tpu_custom_call.1} parent=11 // pred_region
        _
      $region36: #{tpu_custom_call.1} parent=11 // pred_fallthru
        _
      // Predicated region
      $region37: #{tpu_custom_call.1} parent=11 // pred_check
        %p383 = pneg %p219
      $region38: #{tpu_custom_call.1} parent=11 // pred_check_branch
        %385 = sbr.rel (%p383) target = $region40
      $region39: #{tpu_custom_call.1} parent=11 // pred_region
        _
      $region40: #{tpu_custom_call.1} parent=11 // pred_fallthru
        _
      // Predicated region
      $region41: #{tpu_custom_call.1} parent=11 // pred_check
        %p386 = pneg %p240
      $region42: #{tpu_custom_call.1} parent=11 // pred_check_branch
        %388 = sbr.rel (%p386) target = $region44
      $region43: #{tpu_custom_call.1} parent=11 // pred_region
        _
      $region44: #{tpu_custom_call.1} parent=11 // pred_fallthru
        _
      // Predicated region
      $region45: #{tpu_custom_call.1} parent=11 // pred_check
        %p389 = pneg %p261
      $region46: #{tpu_custom_call.1} parent=11 // pred_check_branch
        %391 = sbr.rel (%p389) target = $region48
      $region47: #{tpu_custom_call.1} parent=11 // pred_region
        _
      $region48: #{tpu_custom_call.1} parent=11 // pred_fallthru
        _
      // Predicated region
      $region49: #{tpu_custom_call.1} parent=11 // pred_check
        %p392 = pneg %p282
      $region50: #{tpu_custom_call.1} parent=11 // pred_check_branch
        %394 = sbr.rel (%p392) target = $region52
      $region51: #{tpu_custom_call.1} parent=11 // pred_region
        _
      $region52: #{tpu_custom_call.1} parent=11 // pred_fallthru
        _
      // Predicated region
      $region53: #{tpu_custom_call.1} parent=11 // pred_check
        %p395 = pneg %p303
      $region54: #{tpu_custom_call.1} parent=11 // pred_check_branch
        %397 = sbr.rel (%p395) target = $region56
      $region55: #{tpu_custom_call.1} parent=11 // pred_region
        _
      $region56: #{tpu_custom_call.1} parent=11 // pred_fallthru
        _
      // Predicated region
      $region57: #{tpu_custom_call.1} parent=11 // pred_check
        %p398 = pneg %p324
      $region58: #{tpu_custom_call.1} parent=11 // pred_check_branch
        %400 = sbr.rel (%p398) target = $region60
      $region59: #{tpu_custom_call.1} parent=11 // pred_region
        _
      $region60: #{tpu_custom_call.1} parent=11 // pred_fallthru
        _
    $region12: #{tpu_custom_call.1} parent=5 // pred_fallthru
      _
    %p401 = scmp.lt.s32.totalorder %s20, 4
    // Predicated region
    $region61: #{tpu_custom_call.1} parent=5 // pred_check
      %p402 = pneg %p401
    $region62: #{tpu_custom_call.1} parent=5 // pred_check_branch
      %404 = sbr.rel (%p402) target = $region64
    $region63: #{tpu_custom_call.1} parent=5 // pred_region
      // Predicated region
      $region65: #{tpu_custom_call.1} parent=63 // pred_check
        %p405 = pneg %p40
      $region66: #{tpu_custom_call.1} parent=63 // pred_check_branch
        %407 = sbr.rel (%p405) target = $region68
      $region67: #{tpu_custom_call.1} parent=63 // pred_region
        %s408 = smul.u32 2, %s20
        %p409 = scmp.lt.s32.totalorder %s408, 7
        %s410 = scalar_select %p409, %s408, 7
        %s411 = smul.addr %s410, 8
        %s412 = scalar_lea.vmem %s0, %s411
        %s413 = smul.u32 2, %s20
      $region68: #{tpu_custom_call.1} parent=63 // pred_fallthru
        _
      // Predicated region
      $region69: #{tpu_custom_call.1} parent=63 // pred_check
        %p414 = pneg %p66
      $region70: #{tpu_custom_call.1} parent=63 // pred_check_branch
        %416 = sbr.rel (%p414) target = $region72
      $region71: #{tpu_custom_call.1} parent=63 // pred_region
        %s417 = smul.u32 3, %s20
        %p418 = scmp.lt.s32.totalorder %s417, 11
        %s419 = scalar_select %p418, %s417, 11
        %s420 = smul.addr %s419, 8
        %s421 = scalar_lea.vmem %s1, %s420
        %s422 = smul.u32 3, %s20
      $region72: #{tpu_custom_call.1} parent=63 // pred_fallthru
        _
    $region64: #{tpu_custom_call.1} parent=5 // pred_fallthru
      _
    %p423 = scmp.le.s32.totalorder 1, %s20
    %p424 = scmp.lt.s32.totalorder %s20, 5
    %p425 = pnand %p423, %p424
    %p426 = pneg %p425
    // Predicated region
    $region73: #{tpu_custom_call.1} parent=5 // pred_check
      _
    $region74: #{tpu_custom_call.1} parent=5 // pred_check_branch
      %428 = sbr.rel (%p425) target = $region76
    $region75: #{tpu_custom_call.1} parent=5 // pred_region
      %s429 = ssub.s32 %s20, 1
      %s430 = smul.u32 2, %s25
      %p431 = scmp.lt.s32.totalorder %s430, 7
      %s432 = scalar_select %p431, %s430, 7
      %s433 = smul.addr %s432, 8
      %s434 = scalar_lea.vmem %s0, %s433
      %p435 = pneg %p46
      %p436 = pneg %p43
      %s437 = smul.u32 3, %s25
      %p438 = scmp.lt.s32.totalorder %s437, 11
      %s439 = scalar_select %p438, %s437, 11
      %s440 = smul.addr %s439, 8
      %s441 = scalar_lea.vmem %s1, %s440
      %p442 = pneg %p72
      %p443 = pneg %p69
      %p444 = pneg %p93
      %p445 = pneg %p90
      %p446 = pneg %p114
      %p447 = pneg %p111
      %p448 = pneg %p135
      %p449 = pneg %p132
      %p450 = pneg %p156
      %p451 = pneg %p153
      %p452 = pneg %p177
      %p453 = pneg %p174
      %p454 = pneg %p198
      %p455 = pneg %p195
      %p456 = pneg %p219
      %p457 = pneg %p216
      %p458 = pneg %p240
      %p459 = pneg %p237
      %p460 = pneg %p261
      %p461 = pneg %p258
      %p462 = pneg %p282
      %p463 = pneg %p279
      %p464 = pneg %p303
      %p465 = pneg %p300
      %p466 = pneg %p324
      %p467 = pneg %p321
      %p468 = pneg %p350
      %p469 = pneg %p347
      %s470 = smul.u32 2, %s25
      %p471 = scmp.lt.s32.totalorder %s470, 7
      %s472 = scalar_select %p471, %s470, 7
      %s473 = smul.addr %s472, 8
      %s474 = scalar_lea.vmem %s14, %s473
      %s475 = smul.u32 2, %s25
      %p476 = scmp.lt.s32.totalorder %s475, 7
      %s477 = scalar_select %p476, %s475, 7
      %s478 = smul.addr %s477, 8
      %s479 = scalar_lea.vmem %s0, %s478
      %s480 = smul.u32 2, %s25
      %s481 = smul.u32 3, %s25
      %p482 = scmp.lt.s32.totalorder %s481, 11
      %s483 = scalar_select %p482, %s481, 11
      %s484 = smul.addr %s483, 8
      %s485 = scalar_lea.vmem %s1, %s484
      %s486 = smul.u32 3, %s25
      %s487 = smul.u32 2, %s25
      %p488 = scmp.lt.s32.totalorder %s487, 7
      %s489 = scalar_select %p488, %s487, 7
      %s490 = smul.addr %s489, 8
      %s491 = scalar_lea.vmem %s14, %s490
      %s492 = smul.u32 2, %s25
      %v494 = vld [vmem:[%s479] sm:$0xff]
      %v495 = vld [vmem:[%s479 + $0x8] sm:$0xff]
      %v496 = vld [vmem:[%s485] sm:$0xff]
      %v497 = vld [vmem:[%s485 + $0x8] sm:$0xff]
      %v498 = vld [vmem:[%s485 + $0x10] sm:$0xff]
      %v499 = vld [vmem:[%s2] sm:$0xff]
      %v500 = vld [vmem:[%s2 + $0x8] sm:$0xff]
      %v501 = vld [vmem:[%s2 + $0x10] sm:$0xff]
      %v502 = vld [vmem:[%s2 + $0x18] sm:$0xff]
      %v503 = vld [vmem:[%s7] sm:$0xf]
      %v504 = vld [vmem:[%s7 + $0x4] sm:$0xf]
      %v505 = vld [vmem:[%s7 + $0x8] sm:$0xf]
      %v506 = vld [vmem:[%s7 + $0xc] sm:$0xf]
      %v507 = vpack.c.bf16 %v495, %v494
      %v512 = vunpack.c.l.b16 %v503
      %v513 = vunpack.c.l.b16 %v504
      %v514 = vunpack.c.l.b16 %v505
      %v515 = vunpack.c.l.b16 %v506
      %v516 = vpack.c.b16 %v513, %v512
      %v517 = vpack.c.b16 %v515, %v514
      %vm520 = vcmask 261120
      %v522 = vsel %vm520, %v507, 0
      %524 = vmatprep.subr.bf16.mxu0 0
      %525 = vmatpush1.bf16.msra.mxu0 0
      %526 = vmatprep.subr.bf16.mxu0 0
      %527 = vmatpush1.bf16.msra.mxu0 0
      %528 = vmatprep.subr.bf16.mxu0 0
      %529 = vmatpush1.bf16.msra.mxu0 0
      %530 = vmatprep.subr.bf16.mxu0 0
      %531 = vmatpush1.bf16.msra.mxu0 0
      %532 = vmatprep.subr.bf16.mxu0 0
      %533 = vmatpush1.bf16.msra.mxu0 0
      %534 = vmatprep.subr.bf16.mxu0 0
      %535 = vmatpush1.bf16.msra.mxu0 0
      %536 = vmatprep.subr.bf16.mxu0 0
      %537 = vmatpush1.bf16.msra.mxu0 %v517
      %538 = vmatprep.subr.bf16.mxu0 0
      %539 = vmatpush1.bf16.msra.mxu0 %v516
      %540 = vmatprep.subr.bf16.mxu0 0
      %541 = vmatpush2.bf16.msra.mxu0 0
      %542 = vmatprep.subr.bf16.mxu0 0
      %543 = vmatpush2.bf16.msra.mxu0 0
      %544 = vmatprep.subr.bf16.mxu0 0
      %545 = vmatpush2.bf16.msra.mxu0 0
      %546 = vmatprep.subr.bf16.mxu0 0
      %547 = vmatpush2.bf16.msra.mxu0 0
      %548 = vmatprep.subr.bf16.mxu0 0
      %549 = vmatpush2.bf16.msra.mxu0 0
      %550 = vmatprep.subr.bf16.mxu0 0
      %551 = vmatpush2.bf16.msra.mxu0 0
      %552 = vmatprep.subr.bf16.mxu0 0
      %553 = vmatpush2.bf16.msra.mxu0 0
      %554 = vmatprep.subr.bf16.mxu0 0
      %555 = vmatpush2.bf16.msra.mxu0 0
      %556 = vmatprep.mubr.bf16.mxu0 0
      %557 = vmatmul.mubr.bf16.gmra.mxu0 %v522
      %v558 = vpop.f32.mrf.mxu0
      %v559 = vadd.f32 0.0, %v558
      %v560 = vpop.f32.mrf.mxu0
      %v561 = vpop.f32.mrf.mxu0
      %v562 = vadd.f32 0.0, %v561
      %v563 = vpop.f32.mrf.mxu0
      %564 = vdwg.mxu0
      %vm565 = vcmp.gt.f32.partialorder %v559, 0.0
      %vm566 = vcmp.gt.f32.partialorder %v562, 0.0
      %v567 = vadd.f32 %v559, 1.0
      %v568 = vadd.f32 %v562, 1.0
      %v569 = vmin.f32 %v559, 0.0
      %v570 = vmin.f32 %v562, 0.0
      %v571 = vmul.f32 %v569, 1.442695
      %v572 = vpow.pop %v571
      %v573 = vmul.f32 %v570, 1.442695
      %v574 = vpow.pop %v573
      %v575 = vsel %vm565, %v567, %v572
      %v576 = vsel %vm566, %v568, %v574
      %v577 = vld [vmem:[%s8] sm:$0xf]
      %v578 = vld [vmem:[%s8 + $0x4] sm:$0xf]
      %v579 = vld [vmem:[%s8 + $0x8] sm:$0xf]
      %v580 = vld [vmem:[%s8 + $0xc] sm:$0xf]
      %v581 = vpack.c.bf16 %v497, %v496
      %v582 = vpack.c.bf16 %v498, %v498
      %v587 = vunpack.c.l.b16 %v577
      %v588 = vunpack.c.l.b16 %v578
      %v589 = vunpack.c.l.b16 %v579
      %v590 = vunpack.c.l.b16 %v580
      %v591 = vpack.c.b16 %v588, %v587
      %v592 = vpack.c.b16 %v590, %v589
      %v596 = vsel %vm520, %v581, 0
      %v599 = vsel %vm520, %v582, 0
      %601 = vmatprep.subr.bf16.mxu0 0
      %602 = vmatpush1.bf16.msra.mxu0 0
      %603 = vmatprep.subr.bf16.mxu0 0
      %604 = vmatpush1.bf16.msra.mxu0 0
      %605 = vmatprep.subr.bf16.mxu0 0
      %606 = vmatpush1.bf16.msra.mxu0 0
      %607 = vmatprep.subr.bf16.mxu0 0
      %608 = vmatpush1.bf16.msra.mxu0 0
      %609 = vmatprep.subr.bf16.mxu0 0
      %610 = vmatpush1.bf16.msra.mxu0 0
      %611 = vmatprep.subr.bf16.mxu0 0
      %612 = vmatpush1.bf16.msra.mxu0 0
      %613 = vmatprep.subr.bf16.mxu0 0
      %614 = vmatpush1.bf16.msra.mxu0 %v592
      %615 = vmatprep.subr.bf16.mxu0 0
      %616 = vmatpush1.bf16.msra.mxu0 %v591
      %617 = vmatprep.subr.bf16.mxu0 0
      %618 = vmatpush2.bf16.msra.mxu0 0
      %619 = vmatprep.subr.bf16.mxu0 0
      %620 = vmatpush2.bf16.msra.mxu0 0
      %621 = vmatprep.subr.bf16.mxu0 0
      %622 = vmatpush2.bf16.msra.mxu0 0
      %623 = vmatprep.subr.bf16.mxu0 0
      %624 = vmatpush2.bf16.msra.mxu0 0
      %625 = vmatprep.subr.bf16.mxu0 0
      %626 = vmatpush2.bf16.msra.mxu0 0
      %627 = vmatprep.subr.bf16.mxu0 0
      %628 = vmatpush2.bf16.msra.mxu0 0
      %629 = vmatprep.subr.bf16.mxu0 0
      %630 = vmatpush2.bf16.msra.mxu0 0
      %631 = vmatprep.subr.bf16.mxu0 0
      %632 = vmatpush2.bf16.msra.mxu0 0
      %633 = vmatprep.mubr.bf16.mxu0 0
      %634 = vmatmul.mubr.bf16.gmra.mxu0 %v596
      %v635 = vpop.f32.mrf.mxu0
      %v636 = vadd.f32 0.0, %v635
      %v637 = vpop.f32.mrf.mxu0
      %v638 = vpop.f32.mrf.mxu0
      %v639 = vadd.f32 0.0, %v638
      %v640 = vpop.f32.mrf.mxu0
      %641 = vmatprep.mubr.bf16.mxu0 0
      %642 = vmatmul.mubr.bf16.gmra.mxu0 %v599
      %v643 = vpop.f32.mrf.mxu0
      %v644 = vadd.f32 0.0, %v643
      %v645 = vpop.f32.mrf.mxu0
      %v646 = vpop.f32.mrf.mxu0
      %v647 = vpop.f32.mrf.mxu0
      %648 = vdwg.mxu0
      %vm649 = vcmp.gt.f32.partialorder %v636, 0.0
      %vm650 = vcmp.gt.f32.partialorder %v639, 0.0
      %vm651 = vcmp.gt.f32.partialorder %v644, 0.0
      %v652 = vadd.f32 %v636, 1.0
      %v653 = vadd.f32 %v639, 1.0
      %v654 = vadd.f32 %v644, 1.0
      %v655 = vmin.f32 %v636, 0.0
      %v656 = vmin.f32 %v639, 0.0
      %v657 = vmin.f32 %v644, 0.0
      %v658 = vmul.f32 %v655, 1.442695
      %v659 = vpow.pop %v658
      %v660 = vmul.f32 %v656, 1.442695
      %v661 = vpow.pop %v660
      %v662 = vmul.f32 %v657, 1.442695
      %v663 = vpow.pop %v662
      %v664 = vsel %vm649, %v652, %v659
      %v665 = vsel %vm650, %v653, %v661
      %v666 = vsel %vm651, %v654, %v663
      %v667 = vld [vmem:[%s9] sm:$0xf]
      %v668 = vld [vmem:[%s9 + $0x4] sm:$0xf]
      %v669 = vld [vmem:[%s9 + $0x8] sm:$0xf]
      %v670 = vld [vmem:[%s9 + $0xc] sm:$0xf]
      %v675 = vunpack.c.l.b16 %v667
      %v676 = vunpack.c.l.b16 %v668
      %v677 = vunpack.c.l.b16 %v669
      %v678 = vunpack.c.l.b16 %v670
      %v679 = vpack.c.b16 %v676, %v675
      %v680 = vpack.c.b16 %v678, %v677
      %683 = vmatprep.subr.bf16.mxu0 0
      %684 = vmatpush1.bf16.msra.mxu0 0
      %685 = vmatprep.subr.bf16.mxu0 0
      %686 = vmatpush1.bf16.msra.mxu0 0
      %687 = vmatprep.subr.bf16.mxu0 0
      %688 = vmatpush1.bf16.msra.mxu0 0
      %689 = vmatprep.subr.bf16.mxu0 0
      %690 = vmatpush1.bf16.msra.mxu0 0
      %691 = vmatprep.subr.bf16.mxu0 0
      %692 = vmatpush1.bf16.msra.mxu0 0
      %693 = vmatprep.subr.bf16.mxu0 0
      %694 = vmatpush1.bf16.msra.mxu0 0
      %695 = vmatprep.subr.bf16.mxu0 0
      %696 = vmatpush1.bf16.msra.mxu0 %v680
      %697 = vmatprep.subr.bf16.mxu0 0
      %698 = vmatpush1.bf16.msra.mxu0 %v679
      %699 = vmatprep.subr.bf16.mxu0 0
      %700 = vmatpush2.bf16.msra.mxu0 0
      %701 = vmatprep.subr.bf16.mxu0 0
      %702 = vmatpush2.bf16.msra.mxu0 0
      %703 = vmatprep.subr.bf16.mxu0 0
      %704 = vmatpush2.bf16.msra.mxu0 0
      %705 = vmatprep.subr.bf16.mxu0 0
      %706 = vmatpush2.bf16.msra.mxu0 0
      %707 = vmatprep.subr.bf16.mxu0 0
      %708 = vmatpush2.bf16.msra.mxu0 0
      %709 = vmatprep.subr.bf16.mxu0 0
      %710 = vmatpush2.bf16.msra.mxu0 0
      %711 = vmatprep.subr.bf16.mxu0 0
      %712 = vmatpush2.bf16.msra.mxu0 0
      %713 = vmatprep.subr.bf16.mxu0 0
      %714 = vmatpush2.bf16.msra.mxu0 0
      %715 = vmatprep.mubr.bf16.mxu0 0
      %716 = vmatmul.mubr.bf16.gmra.mxu0 %v596
      %v717 = vpop.f32.mrf.mxu0
      %v718 = vadd.f32 0.0, %v717
      %v719 = vpop.f32.mrf.mxu0
      %v720 = vpop.f32.mrf.mxu0
      %v721 = vadd.f32 0.0, %v720
      %v722 = vpop.f32.mrf.mxu0
      %723 = vmatprep.mubr.bf16.mxu0 0
      %724 = vmatmul.mubr.bf16.gmra.mxu0 %v599
      %v725 = vpop.f32.mrf.mxu0
      %v726 = vadd.f32 0.0, %v725
      %v727 = vpop.f32.mrf.mxu0
      %v728 = vpop.f32.mrf.mxu0
      %v729 = vpop.f32.mrf.mxu0
      %730 = vdwg.mxu0
      %731 = vxpose.xlu0.b32.start [1/16] %v664, 128
      %732 = vxpose.xlu0.b32.cont [2/16] %v665, 128
      %733 = vxpose.xlu0.b32.cont [3/16] %v666, 128
      %734 = vxpose.xlu0.b32.cont [4/16] 0.0, 128
      %735 = vxpose.xlu0.b32.cont [5/16] 0.0, 128
      %736 = vxpose.xlu0.b32.cont [6/16] 0.0, 128
      %737 = vxpose.xlu0.b32.cont [7/16] 0.0, 128
      %738 = vxpose.xlu0.b32.cont [8/16] 0.0, 128
      %739 = vxpose.xlu0.b32.cont [9/16] 0.0, 128
      %740 = vxpose.xlu0.b32.cont [10/16] 0.0, 128
      %741 = vxpose.xlu0.b32.cont [11/16] 0.0, 128
      %742 = vxpose.xlu0.b32.cont [12/16] 0.0, 128
      %743 = vxpose.xlu0.b32.cont [13/16] 0.0, 128
      %744 = vxpose.xlu0.b32.cont [14/16] 0.0, 128
      %745 = vxpose.xlu0.b32.cont [15/16] 0.0, 128
      %746 = vxpose.xlu0.b32.end [16/16] 0.0, 128
      %v747 = vpop.trf.xlu0
      %v748 = vpop.trf.xlu0
      %v749 = vpop.trf.xlu0
      %v750 = vpop.trf.xlu0
      %v751 = vpop.trf.xlu0
      %v752 = vpop.trf.xlu0
      %v753 = vpop.trf.xlu0
      %v754 = vpop.trf.xlu0
      %v755 = vpop.trf.xlu0
      %v756 = vpop.trf.xlu0
      %v757 = vpop.trf.xlu0
      %v758 = vpop.trf.xlu0
      %v759 = vpop.trf.xlu0
      %v760 = vpop.trf.xlu0
      %v761 = vpop.trf.xlu0
      %v762 = vpop.trf.xlu0
      %v763 = vpack.c.bf16 %v748, %v747
      %v764 = vpack.c.bf16 %v750, %v749
      %v765 = vpack.c.bf16 %v721, %v718
      %v766 = vpack.c.bf16 %v726, %v726
      %vm767 = vcmask 195584
      %v769 = vsel %vm767, %v763, 0
      %v772 = vsel %vm767, %v764, 0
      %vm774 = vcmask 1043456
      %v776 = vsel %vm774, %v766, 0
      %778 = vmatprep.subr.bf16.mxu0 0
      %779 = vmatpush1.bf16.msra.mxu0 0
      %780 = vmatprep.subr.bf16.mxu0 0
      %781 = vmatpush1.bf16.msra.mxu0 0
      %782 = vmatprep.subr.bf16.mxu0 0
      %783 = vmatpush1.bf16.msra.mxu0 0
      %784 = vmatprep.subr.bf16.mxu0 0
      %785 = vmatpush1.bf16.msra.mxu0 0
      %786 = vmatprep.subr.bf16.mxu0 0
      %787 = vmatpush1.bf16.msra.mxu0 0
      %788 = vmatprep.subr.bf16.mxu0 0
      %789 = vmatpush1.bf16.msra.mxu0 0
      %790 = vmatprep.subr.bf16.mxu0 0
      %791 = vmatpush1.bf16.msra.mxu0 %v776
      %792 = vmatprep.subr.bf16.mxu0 0
      %793 = vmatpush1.bf16.msra.mxu0 %v765
      %794 = vmatprep.subr.bf16.mxu0 0
      %795 = vmatpush2.bf16.msra.mxu0 0
      %796 = vmatprep.subr.bf16.mxu0 0
      %797 = vmatpush2.bf16.msra.mxu0 0
      %798 = vmatprep.subr.bf16.mxu0 0
      %799 = vmatpush2.bf16.msra.mxu0 0
      %800 = vmatprep.subr.bf16.mxu0 0
      %801 = vmatpush2.bf16.msra.mxu0 0
      %802 = vmatprep.subr.bf16.mxu0 0
      %803 = vmatpush2.bf16.msra.mxu0 0
      %804 = vmatprep.subr.bf16.mxu0 0
      %805 = vmatpush2.bf16.msra.mxu0 0
      %806 = vmatprep.subr.bf16.mxu0 0
      %807 = vmatpush2.bf16.msra.mxu0 0
      %808 = vmatprep.subr.bf16.mxu0 0
      %809 = vmatpush2.bf16.msra.mxu0 0
      %810 = vmatprep.mubr.bf16.mxu0 0
      %811 = vmatmul.mubr.bf16.gmra.mxu0 %v769
      %v812 = vpop.f32.mrf.mxu0
      %v813 = vadd.f32 0.0, %v812
      %v814 = vpop.f32.mrf.mxu0
      %v815 = vpop.f32.mrf.mxu0
      %v816 = vadd.f32 0.0, %v815
      %v817 = vpop.f32.mrf.mxu0
      %818 = vmatprep.mubr.bf16.mxu0 0
      %819 = vmatmul.mubr.bf16.gmra.mxu0 %v772
      %v820 = vpop.f32.mrf.mxu0
      %v821 = vadd.f32 0.0, %v820
      %v822 = vpop.f32.mrf.mxu0
      %v823 = vpop.f32.mrf.mxu0
      %v824 = vadd.f32 0.0, %v823
      %v825 = vpop.f32.mrf.mxu0
      %826 = vdwg.mxu0
      %v827 = vmul.f32 %v813, %v499
      %v828 = vmul.f32 %v816, %v500
      %v829 = vmul.f32 %v821, %v501
      %v830 = vmul.f32 %v824, %v502
      %v831 = vsel %vm520, %v664, 0.0
      %v832 = vsel %vm520, %v665, 0.0
      %v833 = vadd.f32 %v831, %v832
      %v834 = vsel %vm520, %v666, 0.0
      %v835 = vadd.f32 %v833, %v834
      %v836 = vrot.slane %v835, 4
      %v837 = vadd.f32 %v835, %v836
      %v838 = vrot.slane %v837, 2
      %v839 = vadd.f32 %v837, %v838
      %v840 = vrot.slane %v839, 1
      %v841 = vadd.f32 %v839, %v840
      %v842 = vpack.c.bf16 %v576, %v575
      %v843 = vpack.c.bf16 %v828, %v827
      %v844 = vpack.c.bf16 %v830, %v829
      %v846 = vsel %vm520, %v842, 0
      %848 = vmatprep.subr.bf16.mxu0 0
      %849 = vmatpush1.bf16.msra.mxu0 0
      %850 = vmatprep.subr.bf16.mxu0 0
      %851 = vmatpush1.bf16.msra.mxu0 0
      %852 = vmatprep.subr.bf16.mxu0 0
      %853 = vmatpush1.bf16.msra.mxu0 0
      %854 = vmatprep.subr.bf16.mxu0 0
      %855 = vmatpush1.bf16.msra.mxu0 0
      %856 = vmatprep.subr.bf16.mxu0 0
      %857 = vmatpush1.bf16.msra.mxu0 0
      %858 = vmatprep.subr.bf16.mxu0 0
      %859 = vmatpush1.bf16.msra.mxu0 0
      %860 = vmatprep.subr.bf16.mxu0 0
      %861 = vmatpush1.bf16.msra.mxu0 %v844
      %862 = vmatprep.subr.bf16.mxu0 0
      %863 = vmatpush1.bf16.msra.mxu0 %v843
      %864 = vmatprep.subr.bf16.mxu0 0
      %865 = vmatpush2.bf16.msra.mxu0 0
      %866 = vmatprep.subr.bf16.mxu0 0
      %867 = vmatpush2.bf16.msra.mxu0 0
      %868 = vmatprep.subr.bf16.mxu0 0
      %869 = vmatpush2.bf16.msra.mxu0 0
      %870 = vmatprep.subr.bf16.mxu0 0
      %871 = vmatpush2.bf16.msra.mxu0 0
      %872 = vmatprep.subr.bf16.mxu0 0
      %873 = vmatpush2.bf16.msra.mxu0 0
      %874 = vmatprep.subr.bf16.mxu0 0
      %875 = vmatpush2.bf16.msra.mxu0 0
      %876 = vmatprep.subr.bf16.mxu0 0
      %877 = vmatpush2.bf16.msra.mxu0 0
      %878 = vmatprep.subr.bf16.mxu0 0
      %879 = vmatpush2.bf16.msra.mxu0 0
      %880 = vmatprep.mubr.bf16.mxu0 0
      %881 = vmatmul.mubr.bf16.gmra.mxu0 %v846
      %v882 = vpop.f32.mrf.mxu0
      %v883 = vadd.f32 0.0, %v882
      %v884 = vpop.f32.mrf.mxu0
      %v885 = vpop.f32.mrf.mxu0
      %v886 = vadd.f32 0.0, %v885
      %v887 = vpop.f32.mrf.mxu0
      %888 = vdwg.mxu0
      %v889 = vmul.f32 %v575, %v841
      %v890 = vmul.f32 %v576, %v841
      %v891 = vpack.c.bf16 %v890, %v889
      %v892 = vpack.c.bf16 %v500, %v499
      %v893 = vpack.c.bf16 %v502, %v501
      %v895 = vsel %vm520, %v891, 0
      %897 = vmatprep.subr.bf16.mxu0 0
      %898 = vmatpush1.bf16.msra.mxu0 0
      %899 = vmatprep.subr.bf16.mxu0 0
      %900 = vmatpush1.bf16.msra.mxu0 0
      %901 = vmatprep.subr.bf16.mxu0 0
      %902 = vmatpush1.bf16.msra.mxu0 0
      %903 = vmatprep.subr.bf16.mxu0 0
      %904 = vmatpush1.bf16.msra.mxu0 0
      %905 = vmatprep.subr.bf16.mxu0 0
      %906 = vmatpush1.bf16.msra.mxu0 0
      %907 = vmatprep.subr.bf16.mxu0 0
      %908 = vmatpush1.bf16.msra.mxu0 0
      %909 = vmatprep.subr.bf16.mxu0 0
      %910 = vmatpush1.bf16.msra.mxu0 %v893
      %911 = vmatprep.subr.bf16.mxu0 0
      %912 = vmatpush1.bf16.msra.mxu0 %v892
      %913 = vmatprep.subr.bf16.mxu0 0
      %914 = vmatpush2.bf16.msra.mxu0 0
      %915 = vmatprep.subr.bf16.mxu0 0
      %916 = vmatpush2.bf16.msra.mxu0 0
      %917 = vmatprep.subr.bf16.mxu0 0
      %918 = vmatpush2.bf16.msra.mxu0 0
      %919 = vmatprep.subr.bf16.mxu0 0
      %920 = vmatpush2.bf16.msra.mxu0 0
      %921 = vmatprep.subr.bf16.mxu0 0
      %922 = vmatpush2.bf16.msra.mxu0 0
      %923 = vmatprep.subr.bf16.mxu0 0
      %924 = vmatpush2.bf16.msra.mxu0 0
      %925 = vmatprep.subr.bf16.mxu0 0
      %926 = vmatpush2.bf16.msra.mxu0 0
      %927 = vmatprep.subr.bf16.mxu0 0
      %928 = vmatpush2.bf16.msra.mxu0 0
      %929 = vmatprep.mubr.bf16.mxu0 0
      %930 = vmatmul.mubr.bf16.gmra.mxu0 %v895
      %v931 = vpop.f32.mrf.mxu0
      %v932 = vadd.f32 1e-06, %v931
      %v933 = vpop.f32.mrf.mxu0
      %v934 = vpop.f32.mrf.mxu0
      %v935 = vadd.f32 1e-06, %v934
      %v936 = vpop.f32.mrf.mxu0
      %937 = vdwg.mxu0
      %v938 = vrcp.pop %v932
      %v939 = vrcp.pop %v935
      %v940 = vmul.f32 %v883, %v938
      %v941 = vmul.f32 %v886, %v939
      %942 = vst.msk [vmem:[#allocation2] sm:$0xff] %vm520, %v940
      %943 = vst.msk [vmem:[#allocation2 + $0x8] sm:$0xff] %vm520, %v941
      %v944 = vld [vmem:[#allocation2] sm:$0xff]
      %v945 = vld [vmem:[#allocation2 + $0x8] sm:$0xff]
      %v946 = vld [vmem:[%s10] sm:$0xf]
      %v947 = vld [vmem:[%s10 + $0x4] sm:$0xf]
      %v948 = vld [vmem:[%s10 + $0x8] sm:$0xf]
      %v949 = vld [vmem:[%s10 + $0xc] sm:$0xf]
      %v950 = vpack.c.bf16 %v945, %v944
      %v955 = vunpack.c.l.b16 %v946
      %v956 = vunpack.c.l.b16 %v947
      %v957 = vunpack.c.l.b16 %v948
      %v958 = vunpack.c.l.b16 %v949
      %v959 = vpack.c.b16 %v956, %v955
      %v960 = vpack.c.b16 %v958, %v957
      %v964 = vsel %vm520, %v950, 0
      %966 = vmatprep.subr.bf16.mxu0 0
      %967 = vmatpush1.bf16.msra.mxu0 0
      %968 = vmatprep.subr.bf16.mxu0 0
      %969 = vmatpush1.bf16.msra.mxu0 0
      %970 = vmatprep.subr.bf16.mxu0 0
      %971 = vmatpush1.bf16.msra.mxu0 0
      %972 = vmatprep.subr.bf16.mxu0 0
      %973 = vmatpush1.bf16.msra.mxu0 0
      %974 = vmatprep.subr.bf16.mxu0 0
      %975 = vmatpush1.bf16.msra.mxu0 0
      %976 = vmatprep.subr.bf16.mxu0 0
      %977 = vmatpush1.bf16.msra.mxu0 0
      %978 = vmatprep.subr.bf16.mxu0 0
      %979 = vmatpush1.bf16.msra.mxu0 %v960
      %980 = vmatprep.subr.bf16.mxu0 0
      %981 = vmatpush1.bf16.msra.mxu0 %v959
      %982 = vmatprep.subr.bf16.mxu0 0
      %983 = vmatpush2.bf16.msra.mxu0 0
      %984 = vmatprep.subr.bf16.mxu0 0
      %985 = vmatpush2.bf16.msra.mxu0 0
      %986 = vmatprep.subr.bf16.mxu0 0
      %987 = vmatpush2.bf16.msra.mxu0 0
      %988 = vmatprep.subr.bf16.mxu0 0
      %989 = vmatpush2.bf16.msra.mxu0 0
      %990 = vmatprep.subr.bf16.mxu0 0
      %991 = vmatpush2.bf16.msra.mxu0 0
      %992 = vmatprep.subr.bf16.mxu0 0
      %993 = vmatpush2.bf16.msra.mxu0 0
      %994 = vmatprep.subr.bf16.mxu0 0
      %995 = vmatpush2.bf16.msra.mxu0 0
      %996 = vmatprep.subr.bf16.mxu0 0
      %997 = vmatpush2.bf16.msra.mxu0 0
      %998 = vmatprep.mubr.bf16.mxu0 0
      %999 = vmatmul.mubr.bf16.gmra.mxu0 %v964
      %v1000 = vpop.f32.mrf.mxu0
      %v1001 = vadd.f32 0.0, %v1000
      %v1002 = vpop.f32.mrf.mxu0
      %v1003 = vpop.f32.mrf.mxu0
      %v1004 = vadd.f32 0.0, %v1003
      %v1005 = vpop.f32.mrf.mxu0
      %1006 = vdwg.mxu0
      %v1007 = vld [vmem:[%s3] sm:$0x1]
      %v1008 = vld [vmem:[%s4] sm:$0x1]
      %v1009 = vsel %vm520, %v1001, 0.0
      %1010 = vadd.xlane.f32.xlu0 %v1009
      %v1011 = vpop.xlane.xlu0 %1010
      %v1012 = vsel %vm520, %v1004, 0.0
      %1013 = vadd.xlane.f32.xlu0 %v1012
      %v1014 = vpop.xlane.xlu0 %1013
      %v1015 = vrcp.pop 32.0
      %v1016 = vmul.f32 %v1011, %v1015
      %v1017 = vmul.f32 %v1014, %v1015
      %v1018 = vsub.f32 %v1001, %v1016
      %v1019 = vsub.f32 %v1004, %v1017
      %v1020 = vmul.f32 %v1018, %v1018
      %v1021 = vmul.f32 %v1019, %v1019
      %v1022 = vsel %vm520, %v1020, 0.0
      %1023 = vadd.xlane.f32.xlu0 %v1022
      %v1024 = vpop.xlane.xlu0 %1023
      %v1025 = vsel %vm520, %v1021, 0.0
      %1026 = vadd.xlane.f32.xlu0 %v1025
      %v1027 = vpop.xlane.xlu0 %1026
      %v1028 = vmul.f32 %v1024, %v1015
      %v1029 = vmul.f32 %v1027, %v1015
      %v1030 = vadd.f32 %v1028, 1e-05
      %v1031 = vadd.f32 %v1029, 1e-05
      %v1032 = vrsqrt.pop %v1030
      %v1033 = vrsqrt.pop %v1031
      %v1034 = vmul.f32 %v1018, %v1032
      %v1035 = vmul.f32 %v1019, %v1033
      %v1037 = vlaneseq
      %v1038 = vshrl.u32 %v1037, 7
      %v1039 = vsub.s32 0, %v1038
      %v1040 = vrot.slane %v1007, %v1039
      %v1042 = vmul.f32 %v1034, %v1040
      %v1043 = vmul.f32 %v1035, %v1040
      %v1045 = vlaneseq
      %v1046 = vshrl.u32 %v1045, 7
      %v1047 = vsub.s32 0, %v1046
      %v1048 = vrot.slane %v1008, %v1047
      %v1050 = vadd.f32 %v1042, %v1048
      %v1051 = vadd.f32 %v1043, %v1048
      %v1052 = vld [vmem:[%s11] sm:$0xf]
      %v1053 = vld [vmem:[%s11 + $0x4] sm:$0xf]
      %v1054 = vld [vmem:[%s11 + $0x8] sm:$0xf]
      %v1055 = vld [vmem:[%s11 + $0xc] sm:$0xf]
      %v1056 = vld [vmem:[%s12] sm:$0xf]
      %v1057 = vld [vmem:[%s12 + $0x4] sm:$0xf]
      %v1058 = vld [vmem:[%s12 + $0x8] sm:$0xf]
      %v1059 = vld [vmem:[%s12 + $0xc] sm:$0xf]
      %v1060 = vpack.c.bf16 %v1051, %v1050
      %v1065 = vunpack.c.l.b16 %v1056
      %v1066 = vunpack.c.l.b16 %v1057
      %v1067 = vunpack.c.l.b16 %v1058
      %v1068 = vunpack.c.l.b16 %v1059
      %v1069 = vpack.c.b16 %v1066, %v1065
      %v1070 = vpack.c.b16 %v1068, %v1067
      %v1074 = vsel %vm520, %v1060, 0
      %1076 = vmatprep.subr.bf16.mxu0 0
      %1077 = vmatpush1.bf16.msra.mxu0 0
      %1078 = vmatprep.subr.bf16.mxu0 0
      %1079 = vmatpush1.bf16.msra.mxu0 0
      %1080 = vmatprep.subr.bf16.mxu0 0
      %1081 = vmatpush1.bf16.msra.mxu0 0
      %1082 = vmatprep.subr.bf16.mxu0 0
      %1083 = vmatpush1.bf16.msra.mxu0 0
      %1084 = vmatprep.subr.bf16.mxu0 0
      %1085 = vmatpush1.bf16.msra.mxu0 0
      %1086 = vmatprep.subr.bf16.mxu0 0
      %1087 = vmatpush1.bf16.msra.mxu0 0
      %1088 = vmatprep.subr.bf16.mxu0 0
      %1089 = vmatpush1.bf16.msra.mxu0 %v1070
      %1090 = vmatprep.subr.bf16.mxu0 0
      %1091 = vmatpush1.bf16.msra.mxu0 %v1069
      %1092 = vmatprep.subr.bf16.mxu0 0
      %1093 = vmatpush2.bf16.msra.mxu0 0
      %1094 = vmatprep.subr.bf16.mxu0 0
      %1095 = vmatpush2.bf16.msra.mxu0 0
      %1096 = vmatprep.subr.bf16.mxu0 0
      %1097 = vmatpush2.bf16.msra.mxu0 0
      %1098 = vmatprep.subr.bf16.mxu0 0
      %1099 = vmatpush2.bf16.msra.mxu0 0
      %1100 = vmatprep.subr.bf16.mxu0 0
      %1101 = vmatpush2.bf16.msra.mxu0 0
      %1102 = vmatprep.subr.bf16.mxu0 0
      %1103 = vmatpush2.bf16.msra.mxu0 0
      %1104 = vmatprep.subr.bf16.mxu0 0
      %1105 = vmatpush2.bf16.msra.mxu0 0
      %1106 = vmatprep.subr.bf16.mxu0 0
      %1107 = vmatpush2.bf16.msra.mxu0 0
      %1108 = vmatprep.mubr.bf16.mxu0 0
      %1109 = vmatmul.mubr.bf16.gmra.mxu0 %v1074
      %v1110 = vpop.f32.mrf.mxu0
      %v1111 = vadd.f32 0.0, %v1110
      %v1112 = vpop.f32.mrf.mxu0
      %v1113 = vpop.f32.mrf.mxu0
      %v1114 = vadd.f32 0.0, %v1113
      %v1115 = vpop.f32.mrf.mxu0
      %1116 = vdwg.mxu0
      %v1121 = vunpack.c.l.b16 %v1052
      %v1122 = vunpack.c.l.b16 %v1053
      %v1123 = vunpack.c.l.b16 %v1054
      %v1124 = vunpack.c.l.b16 %v1055
      %v1125 = vpack.c.b16 %v1122, %v1121
      %v1126 = vpack.c.b16 %v1124, %v1123
      %1129 = vmatprep.subr.bf16.mxu0 0
      %1130 = vmatpush1.bf16.msra.mxu0 0
      %1131 = vmatprep.subr.bf16.mxu0 0
      %1132 = vmatpush1.bf16.msra.mxu0 0
      %1133 = vmatprep.subr.bf16.mxu0 0
      %1134 = vmatpush1.bf16.msra.mxu0 0
      %1135 = vmatprep.subr.bf16.mxu0 0
      %1136 = vmatpush1.bf16.msra.mxu0 0
      %1137 = vmatprep.subr.bf16.mxu0 0
      %1138 = vmatpush1.bf16.msra.mxu0 0
      %1139 = vmatprep.subr.bf16.mxu0 0
      %1140 = vmatpush1.bf16.msra.mxu0 0
      %1141 = vmatprep.subr.bf16.mxu0 0
      %1142 = vmatpush1.bf16.msra.mxu0 %v1126
      %1143 = vmatprep.subr.bf16.mxu0 0
      %1144 = vmatpush1.bf16.msra.mxu0 %v1125
      %1145 = vmatprep.subr.bf16.mxu0 0
      %1146 = vmatpush2.bf16.msra.mxu0 0
      %1147 = vmatprep.subr.bf16.mxu0 0
      %1148 = vmatpush2.bf16.msra.mxu0 0
      %1149 = vmatprep.subr.bf16.mxu0 0
      %1150 = vmatpush2.bf16.msra.mxu0 0
      %1151 = vmatprep.subr.bf16.mxu0 0
      %1152 = vmatpush2.bf16.msra.mxu0 0
      %1153 = vmatprep.subr.bf16.mxu0 0
      %1154 = vmatpush2.bf16.msra.mxu0 0
      %1155 = vmatprep.subr.bf16.mxu0 0
      %1156 = vmatpush2.bf16.msra.mxu0 0
      %1157 = vmatprep.subr.bf16.mxu0 0
      %1158 = vmatpush2.bf16.msra.mxu0 0
      %1159 = vmatprep.subr.bf16.mxu0 0
      %1160 = vmatpush2.bf16.msra.mxu0 0
      %1161 = vmatprep.mubr.bf16.mxu0 0
      %1162 = vmatmul.mubr.bf16.gmra.mxu0 %v522
      %v1163 = vpop.f32.mrf.mxu0
      %v1164 = vadd.f32 %v1111, %v1163
      %v1165 = vpop.f32.mrf.mxu0
      %v1166 = vpop.f32.mrf.mxu0
      %v1167 = vadd.f32 %v1114, %v1166
      %v1168 = vpop.f32.mrf.mxu0
      %1169 = vdwg.mxu0
      %v1170 = vmax.f32 %v1164, 0.0
      %v1171 = vmax.f32 %v1167, 0.0
      %v1172 = vld [vmem:[%s13] sm:$0xf]
      %v1173 = vld [vmem:[%s13 + $0x4] sm:$0xf]
      %v1174 = vld [vmem:[%s13 + $0x8] sm:$0xf]
      %v1175 = vld [vmem:[%s13 + $0xc] sm:$0xf]
      %v1176 = vld [vmem:[%s13 + $0x10] sm:$0xf]
      %v1177 = vld [vmem:[%s13 + $0x14] sm:$0xf]
      %v1178 = vld [vmem:[%s13 + $0x18] sm:$0xf]
      %v1179 = vld [vmem:[%s13 + $0x1c] sm:$0xf]
      %v1180 = vpack.c.bf16 %v1171, %v1170
      %v1189 = vunpack.c.l.b16 %v1172
      %v1190 = vunpack.c.l.b16 %v1173
      %v1191 = vunpack.c.l.b16 %v1174
      %v1192 = vunpack.c.l.b16 %v1175
      %v1193 = vunpack.c.l.b16 %v1176
      %v1194 = vunpack.c.l.b16 %v1177
      %v1195 = vunpack.c.l.b16 %v1178
      %v1196 = vunpack.c.l.b16 %v1179
      %v1197 = vpack.c.b16 %v1190, %v1189
      %v1198 = vpack.c.b16 %v1192, %v1191
      %v1199 = vpack.c.b16 %v1194, %v1193
      %v1200 = vpack.c.b16 %v1196, %v1195
      %vm1205 = vcmask 523264
      %v1207 = vsel %vm1205, %v1180, 0
      %1209 = vmatprep.subr.bf16.mxu0 0
      %1210 = vmatpush1.bf16.msra.mxu0 0
      %1211 = vmatprep.subr.bf16.mxu0 0
      %1212 = vmatpush1.bf16.msra.mxu0 0
      %1213 = vmatprep.subr.bf16.mxu0 0
      %1214 = vmatpush1.bf16.msra.mxu0 0
      %1215 = vmatprep.subr.bf16.mxu0 0
      %1216 = vmatpush1.bf16.msra.mxu0 0
      %1217 = vmatprep.subr.bf16.mxu0 0
      %1218 = vmatpush1.bf16.msra.mxu0 %v1200
      %1219 = vmatprep.subr.bf16.mxu0 0
      %1220 = vmatpush1.bf16.msra.mxu0 %v1199
      %1221 = vmatprep.subr.bf16.mxu0 0
      %1222 = vmatpush1.bf16.msra.mxu0 %v1198
      %1223 = vmatprep.subr.bf16.mxu0 0
      %1224 = vmatpush1.bf16.msra.mxu0 %v1197
      %1225 = vmatprep.subr.bf16.mxu0 0
      %1226 = vmatpush2.bf16.msra.mxu0 0
      %1227 = vmatprep.subr.bf16.mxu0 0
      %1228 = vmatpush2.bf16.msra.mxu0 0
      %1229 = vmatprep.subr.bf16.mxu0 0
      %1230 = vmatpush2.bf16.msra.mxu0 0
      %1231 = vmatprep.subr.bf16.mxu0 0
      %1232 = vmatpush2.bf16.msra.mxu0 0
      %1233 = vmatprep.subr.bf16.mxu0 0
      %1234 = vmatpush2.bf16.msra.mxu0 0
      %1235 = vmatprep.subr.bf16.mxu0 0
      %1236 = vmatpush2.bf16.msra.mxu0 0
      %1237 = vmatprep.subr.bf16.mxu0 0
      %1238 = vmatpush2.bf16.msra.mxu0 0
      %1239 = vmatprep.subr.bf16.mxu0 0
      %1240 = vmatpush2.bf16.msra.mxu0 0
      %1241 = vmatprep.mubr.bf16.mxu0 0
      %1242 = vmatmul.mubr.bf16.gmra.mxu0 %v1207
      %v1243 = vpop.f32.mrf.mxu0
      %v1244 = vadd.f32 0.0, %v1243
      %v1245 = vpop.f32.mrf.mxu0
      %v1246 = vpop.f32.mrf.mxu0
      %v1247 = vadd.f32 0.0, %v1246
      %v1248 = vpop.f32.mrf.mxu0
      %1249 = vdwg.mxu0
      %v1250 = vld [vmem:[%s5] sm:$0x1]
      %v1251 = vld [vmem:[%s6] sm:$0x1]
      %v1252 = vsel %vm520, %v1244, 0.0
      %1253 = vadd.xlane.f32.xlu0 %v1252
      %v1254 = vpop.xlane.xlu0 %1253
      %v1255 = vsel %vm520, %v1247, 0.0
      %1256 = vadd.xlane.f32.xlu0 %v1255
      %v1257 = vpop.xlane.xlu0 %1256
      %v1258 = vmul.f32 %v1254, %v1015
      %v1259 = vmul.f32 %v1257, %v1015
      %v1260 = vsub.f32 %v1244, %v1258
      %v1261 = vsub.f32 %v1247, %v1259
      %v1262 = vmul.f32 %v1260, %v1260
      %v1263 = vmul.f32 %v1261, %v1261
      %v1264 = vsel %vm520, %v1262, 0.0
      %1265 = vadd.xlane.f32.xlu0 %v1264
      %v1266 = vpop.xlane.xlu0 %1265
      %v1267 = vsel %vm520, %v1263, 0.0
      %1268 = vadd.xlane.f32.xlu0 %v1267
      %v1269 = vpop.xlane.xlu0 %1268
      %v1270 = vmul.f32 %v1266, %v1015
      %v1271 = vmul.f32 %v1269, %v1015
      %v1272 = vadd.f32 %v1270, 1e-05
      %v1273 = vadd.f32 %v1271, 1e-05
      %v1274 = vrsqrt.pop %v1272
      %v1275 = vrsqrt.pop %v1273
      %v1276 = vmul.f32 %v1260, %v1274
      %v1277 = vmul.f32 %v1261, %v1275
      %v1279 = vlaneseq
      %v1280 = vshrl.u32 %v1279, 7
      %v1281 = vsub.s32 0, %v1280
      %v1282 = vrot.slane %v1250, %v1281
      %v1284 = vmul.f32 %v1276, %v1282
      %v1285 = vmul.f32 %v1277, %v1282
      %v1287 = vlaneseq
      %v1288 = vshrl.u32 %v1287, 7
      %v1289 = vsub.s32 0, %v1288
      %v1290 = vrot.slane %v1251, %v1289
      %v1292 = vadd.f32 %v1284, %v1290
      %v1293 = vadd.f32 %v1285, %v1290
      %v1294 = vadd.f32 %v494, %v1292
      %v1295 = vadd.f32 %v495, %v1293
      %1296 = vst.msk [vmem:[%s491] sm:$0xff] %vm520, %v1294
      %1297 = vst.msk [vmem:[%s491 + $0x8] sm:$0xff] %vm520, %v1295
      %s1298 = smul.u32 2, %s25
      %p1299 = scmp.lt.s32.totalorder %s1298, 7
      %s1300 = scalar_select %p1299, %s1298, 7
      %s1301 = smul.addr %s1300, 8
      %s1302 = scalar_lea.vmem %s14, %s1301
      // Predicated region
      $region77: #{tpu_custom_call.1} parent=75 // pred_check
        %p1303 = pneg %p347
      $region78: #{tpu_custom_call.1} parent=75 // pred_check_branch
        %1305 = sbr.rel (%p1303) target = $region80
      $region79: #{tpu_custom_call.1} parent=75 // pred_region
        %s1306 = smul.u32 2, %s25
      $region80: #{tpu_custom_call.1} parent=75 // pred_fallthru
        _
    $region76: #{tpu_custom_call.1} parent=5 // pred_fallthru
      _
    %p1307 = scmp.le.s32.totalorder 2, %s20
    // Predicated region
    $region81: #{tpu_custom_call.1} parent=5 // pred_check
      %p1308 = pneg %p1307
    $region82: #{tpu_custom_call.1} parent=5 // pred_check_branch
      %1310 = sbr.rel (%p1308) target = $region84
    $region83: #{tpu_custom_call.1} parent=5 // pred_region
      %s1311 = ssub.s32 %s20, 2
      // Predicated region
      $region85: #{tpu_custom_call.1} parent=83 // pred_check
        %p1312 = pneg %p353
      $region86: #{tpu_custom_call.1} parent=83 // pred_check_branch
        %1314 = sbr.rel (%p1312) target = $region88
      $region87: #{tpu_custom_call.1} parent=83 // pred_region
        %s1315 = smul.u32 2, %s26
        %p1316 = scmp.lt.s32.totalorder %s1315, 7
        %s1317 = scalar_select %p1316, %s1315, 7
        %s1318 = smul.addr %s1317, 8
        %s1319 = scalar_lea.vmem %s14, %s1318
      $region88: #{tpu_custom_call.1} parent=83 // pred_fallthru
        _
    $region84: #{tpu_custom_call.1} parent=5 // pred_fallthru
      _
  $region6: #{tpu_custom_call.1} parent=0 // loop_footer
    %s24 = sadd.s32 1, %s20
  $region7: #{tpu_custom_call.1} parent=0 // loop_footer_branch
    %19 = sbr.rel target = $region3
  $region8: #{tpu_custom_call.1} parent=0 // loop_exit
    _

</llo_original>
